<compile_context>
chip_gen: v7x
topology: tpu7x:2x2x1
jax: 0.10.0
libtpu: 0.0.40
codegen_flags: <defaults>
</compile_context>

<pallas_src>
import jax
import jax.numpy as jnp
from jax import lax
from jax.experimental import pallas as pl
from jax.experimental.pallas import tpu as pltpu

EPS = 1e-5


def _round_up(n, m):
    return ((n + m - 1) // m) * m


def _bn_relu(h, gamma, beta):
    """Training-mode BatchNorm1d (batch stats, biased var) + ReLU, one data pass."""
    mean = jnp.mean(h, axis=0, keepdims=True)
    meansq = jnp.mean(h * h, axis=0, keepdims=True)
    var = jnp.maximum(meansq - mean * mean, 0.0)
    scale = lax.rsqrt(var + EPS) * gamma
    return jnp.maximum(h * scale + (beta - mean * scale), 0.0)


def critic_kernel(x_ref, act_ref, dqa_ref,        # activations
                  w1x_ref, w1a_ref,               # first layer, split weight blocks
                  w2_ref, w3_ref, w4_ref,         # remaining weights (padded)
                  vec_ref,                        # packed (11, HP) per-layer vectors
                  o_ref):
    v = vec_ref[...]                              # (11, HP)
    w1d, b1 = v[0:1, :], v[1:2, :]                # folded: gamma0*w1d, b1+beta0*w1d
    g1, be1 = v[2:3, :], v[3:4, :]
    b2, g2, be2 = v[4:5, :], v[5:6, :], v[6:7, :]
    b3, g3, be3 = v[7:8, :], v[8:9, :], v[9:10, :]
    b4 = v[10:11, :o_ref.shape[1]]

    # bn_input on ddqn_a (B, 1): standardize with batch stats; affine folded out.
    d = dqa_ref[...]
    mu = jnp.mean(d, axis=0, keepdims=True)
    var0 = jnp.maximum(jnp.mean(d * d, axis=0, keepdims=True) - mu * mu, 0.0)
    d_z = (d - mu) * lax.rsqrt(var0 + EPS)

    # Linear 1 on the virtual concatenation [input | bn(ddqn_a) | action].
    h = (jnp.dot(x_ref[...], w1x_ref[...], preferred_element_type=jnp.float32)
         + jnp.dot(act_ref[...], w1a_ref[...], preferred_element_type=jnp.float32)
         + d_z * w1d        # (B,1)*(1,HP) == matmul with K=1 column
         + b1)
    h = _bn_relu(h, g1, be1)

    h = _bn_relu(
        jnp.dot(h, w2_ref[...], preferred_element_type=jnp.float32) + b2, g2, be2)
    h = _bn_relu(
        jnp.dot(h, w3_ref[...], preferred_element_type=jnp.float32) + b3, g3, be3)

    o_ref[...] = jnp.dot(h, w4_ref[...], preferred_element_type=jnp.float32) + b4


# ----------------------------------------------------------------------------
# Parameters: logical (PyTorch-shaped) params + host-side packing/padding.
# ----------------------------------------------------------------------------

def make_params(key, input_dims, action_nums, neuron_nums=(300, 300, 300)):
    """Logical parameters. Linear weights stored transposed: (in, out)."""
    params = {}
    ks = iter(jax.random.split(key, 16))
    n1, n2, n3 = neuron_nums
    deep_in = input_dims + 1 + action_nums   # order in cat: input, bn(ddqn_a), action

    def linear(k, fan_in, fan_out):
        bound = fan_in ** -0.5
        kw, kb = jax.random.split(k)
        w = jax.random.uniform(kw, (fan_in, fan_out), jnp.float32, -bound, bound)
        b = jax.random.uniform(kb, (1, fan_out), jnp.float32, -bound, bound)
        return w, b

    def bn_affine(k, n):
        kg, kb = jax.random.split(k)
        g = jax.random.uniform(kg, (1, n), jnp.float32, 0.5, 1.5)
        b = jax.random.uniform(kb, (1, n), jnp.float32, -0.5, 0.5)
        return g, b

    params["bn0_g"], params["bn0_b"] = bn_affine(next(ks), 1)

    w1, b1 = linear(next(ks), deep_in, n1)
    params["w1x"] = w1[:input_dims, :]
    params["w1d"] = w1[input_dims:input_dims + 1, :]
    params["w1a"] = w1[input_dims + 1:, :]
    params["b1"] = b1
    params["g1"], params["be1"] = bn_affine(next(ks), n1)

    params["w2"], params["b2"] = linear(next(ks), n1, n2)
    params["g2"], params["be2"] = bn_affine(next(ks), n2)

    params["w3"], params["b3"] = linear(next(ks), n2, n3)
    params["g3"], params["be3"] = bn_affine(next(ks), n3)

    params["w4"], params["b4"] = linear(next(ks), n3, action_nums)
    return params


def pack_params(p, input_dims, action_nums):
    """Fold bn_input affine, zero-pad to lane-aligned widths, pack vectors."""
    n1, n2, n3 = p["b1"].shape[1], p["b2"].shape[1], p["b3"].shape[1]
    HP = _round_up(max(n1, n2, n3), 128)     # 300 -> 384
    OUT = _round_up(action_nums, 128)        # lane-dense output slab

    def padc(a, cols):
        return jnp.pad(a, ((0, 0), (0, cols - a.shape[1])))

    def padr(a, rows):
        return jnp.pad(a, ((0, rows - a.shape[0]), (0, 0)))

    # Fold bn_input affine into the ddqn_a weight column / first-layer bias:
    #   bn(d) @ w1d = z*gamma0*w1d + beta0*w1d   (z = standardized ddqn_a)
    w1d_f = p["bn0_g"] * p["w1d"]              # (1, n1)
    b1_f = p["b1"] + p["bn0_b"] * p["w1d"]     # (1, n1)

    kp = {
        "w1x": padc(p["w1x"], HP),
        "w1a": padc(p["w1a"], HP),
        "w2": padc(padr(p["w2"], HP), HP),
        "w3": padc(padr(p["w3"], HP), HP),
        "w4": padc(padr(p["w4"], HP), OUT),
    }
    rows = [w1d_f, b1_f, p["g1"], p["be1"],
            p["b2"], p["g2"], p["be2"],
            p["b3"], p["g3"], p["be3"],
            p["b4"]]
    kp["vecs"] = jnp.concatenate([padc(r, HP) for r in rows], axis=0)  # (11, HP)
    return kp


# ----------------------------------------------------------------------------
# Wrapper
# ----------------------------------------------------------------------------

def critic_forward(x, action, ddqn_a, kp, action_nums):
    B = x.shape[0]
    OUT = kp["w4"].shape[1]
    vmem = pl.BlockSpec(memory_space=pltpu.MemorySpace.VMEM)
    args = (x, action, ddqn_a,
            kp["w1x"], kp["w1a"], kp["w2"], kp["w3"], kp["w4"], kp["vecs"])
    out = pl.pallas_call(
        critic_kernel,
        out_shape=jax.ShapeDtypeStruct((B, OUT), jnp.float32),
        in_specs=[vmem] * len(args),
        out_specs=vmem,
    )(*args)
    return out[:, :action_nums]


def critic_reference(x, action, ddqn_a, params):
    """Plain-JAX reference (training-mode BN, unpadded, unfused)."""
    def bn(h, g, b):
        m = jnp.mean(h, axis=0, keepdims=True)
        v = jnp.mean((h - m) ** 2, axis=0, keepdims=True)
        return (h - m) / jnp.sqrt(v + EPS) * g + b

    d_n = bn(ddqn_a, params["bn0_g"], params["bn0_b"])
    cat = jnp.concatenate([x, d_n, action], axis=1)
    w1 = jnp.concatenate([params["w1x"], params["w1d"], params["w1a"]], axis=0)
    h = jax.nn.relu(bn(cat @ w1 + params["b1"], params["g1"], params["be1"]))
    h = jax.nn.relu(bn(h @ params["w2"] + params["b2"], params["g2"], params["be2"]))
    h = jax.nn.relu(bn(h @ params["w3"] + params["b3"], params["g3"], params["be3"]))
    return h @ params["w4"] + params["b4"]


if __name__ == "__main__":
    key = jax.random.PRNGKey(0)
    k_x, k_a, k_d, k_p = jax.random.split(key, 4)

    # Small example shapes consistent with Critic.forward:
    #   input : (B, input_dims), action : (B, action_nums), ddqn_a : (B, 1)
    B, input_dims, action_nums = 8, 16, 4
    x = jax.random.normal(k_x, (B, input_dims), jnp.float32)
    action = jax.random.normal(k_a, (B, action_nums), jnp.float32)
    ddqn_a = jax.random.normal(k_d, (B, 1), jnp.float32)

    params = make_params(k_p, input_dims, action_nums)
    kparams = pack_params(params, input_dims, action_nums)

    q = critic_forward(x, action, ddqn_a, kparams, action_nums)
    q = jax.block_until_ready(q)

    q_ref = critic_reference(x, action, ddqn_a, params)
    assert q.shape == (B, action_nums)
    assert jnp.allclose(q, q_ref, atol=1e-4, rtol=1e-4), "mismatch vs JAX reference"

    print("KERNEL_OK")
</pallas_src>

<mosaic_0001>
module attributes {stable_mosaic.version = 11 : i64} {
  func.func @critic_kernel(%arg0: memref<8x16xf32, #tpu.memory_space<vmem>>, %arg1: memref<8x4xf32, #tpu.memory_space<vmem>>, %arg2: memref<8x1xf32, #tpu.memory_space<vmem>>, %arg3: memref<16x384xf32, #tpu.memory_space<vmem>>, %arg4: memref<4x384xf32, #tpu.memory_space<vmem>>, %arg5: memref<384x384xf32, #tpu.memory_space<vmem>>, %arg6: memref<384x384xf32, #tpu.memory_space<vmem>>, %arg7: memref<384x128xf32, #tpu.memory_space<vmem>>, %arg8: memref<11x384xf32, #tpu.memory_space<vmem>>, %arg9: memref<8x128xf32, #tpu.memory_space<vmem>>) attributes {dimension_semantics = [], scalar_prefetch = 0 : i64, scratch_operands = 0 : i64, tpu.core_type = #tpu.core_type<tc>} {
    %c0 = arith.constant 0 : index
    %c0_0 = arith.constant 0 : index
    %0 = vector.load %arg8[%c0, %c0_0] : memref<11x384xf32, #tpu.memory_space<vmem>>, vector<11x384xf32>
    %1 = vector.extract_strided_slice %0 {offsets = [0, 0], sizes = [1, 384], strides = [1, 1]} : vector<11x384xf32> to vector<1x384xf32>
    %2 = vector.extract_strided_slice %0 {offsets = [1, 0], sizes = [1, 384], strides = [1, 1]} : vector<11x384xf32> to vector<1x384xf32>
    %3 = vector.extract_strided_slice %0 {offsets = [2, 0], sizes = [1, 384], strides = [1, 1]} : vector<11x384xf32> to vector<1x384xf32>
    %4 = vector.extract_strided_slice %0 {offsets = [3, 0], sizes = [1, 384], strides = [1, 1]} : vector<11x384xf32> to vector<1x384xf32>
    %5 = vector.extract_strided_slice %0 {offsets = [4, 0], sizes = [1, 384], strides = [1, 1]} : vector<11x384xf32> to vector<1x384xf32>
    %6 = vector.extract_strided_slice %0 {offsets = [5, 0], sizes = [1, 384], strides = [1, 1]} : vector<11x384xf32> to vector<1x384xf32>
    %7 = vector.extract_strided_slice %0 {offsets = [6, 0], sizes = [1, 384], strides = [1, 1]} : vector<11x384xf32> to vector<1x384xf32>
    %8 = vector.extract_strided_slice %0 {offsets = [7, 0], sizes = [1, 384], strides = [1, 1]} : vector<11x384xf32> to vector<1x384xf32>
    %9 = vector.extract_strided_slice %0 {offsets = [8, 0], sizes = [1, 384], strides = [1, 1]} : vector<11x384xf32> to vector<1x384xf32>
    %10 = vector.extract_strided_slice %0 {offsets = [9, 0], sizes = [1, 384], strides = [1, 1]} : vector<11x384xf32> to vector<1x384xf32>
    %11 = vector.extract_strided_slice %0 {offsets = [10, 0], sizes = [1, 128], strides = [1, 1]} : vector<11x384xf32> to vector<1x128xf32>
    %c0_1 = arith.constant 0 : index
    %c0_2 = arith.constant 0 : index
    %12 = vector.load %arg2[%c0_1, %c0_2] : memref<8x1xf32, #tpu.memory_space<vmem>>, vector<8x1xf32>
    %cst = arith.constant dense<0.000000e+00> : vector<1xf32>
    %13 = vector.multi_reduction <add>, %12, %cst [0] : vector<8x1xf32> to vector<1xf32>
    %14 = vector.shape_cast %13 : vector<1xf32> to vector<1x1xf32>
    %cst_3 = arith.constant 8.000000e+00 : f32
    %15 = vector.broadcast %cst_3 : f32 to vector<1x1xf32>
    %16 = arith.divf %14, %15 : vector<1x1xf32>
    %17 = arith.mulf %12, %12 : vector<8x1xf32>
    %cst_4 = arith.constant dense<0.000000e+00> : vector<1xf32>
    %18 = vector.multi_reduction <add>, %17, %cst_4 [0] : vector<8x1xf32> to vector<1xf32>
    %19 = vector.shape_cast %18 : vector<1xf32> to vector<1x1xf32>
    %cst_5 = arith.constant 8.000000e+00 : f32
    %20 = vector.broadcast %cst_5 : f32 to vector<1x1xf32>
    %21 = arith.divf %19, %20 : vector<1x1xf32>
    %22 = arith.mulf %16, %16 : vector<1x1xf32>
    %23 = arith.subf %21, %22 : vector<1x1xf32>
    %cst_6 = arith.constant 0.000000e+00 : f32
    %24 = vector.broadcast %cst_6 : f32 to vector<1x1xf32>
    %25 = arith.maximumf %23, %24 : vector<1x1xf32>
    %26 = vector.broadcast %16 : vector<1x1xf32> to vector<8x1xf32>
    %27 = arith.subf %12, %26 : vector<8x1xf32>
    %cst_7 = arith.constant 9.99999974E-6 : f32
    %28 = vector.broadcast %cst_7 : f32 to vector<1x1xf32>
    %29 = arith.addf %25, %28 : vector<1x1xf32>
    %30 = math.rsqrt %29 : vector<1x1xf32>
    %31 = vector.broadcast %30 : vector<1x1xf32> to vector<8x1xf32>
    %32 = arith.mulf %27, %31 : vector<8x1xf32>
    %c0_8 = arith.constant 0 : index
    %c0_9 = arith.constant 0 : index
    %33 = vector.load %arg0[%c0_8, %c0_9] : memref<8x16xf32, #tpu.memory_space<vmem>>, vector<8x16xf32>
    %c0_10 = arith.constant 0 : index
    %c0_11 = arith.constant 0 : index
    %34 = vector.load %arg3[%c0_10, %c0_11] : memref<16x384xf32, #tpu.memory_space<vmem>>, vector<16x384xf32>
    %cst_12 = arith.constant dense<0.000000e+00> : vector<8x384xf32>
    %35 = tpu.matmul %33, %34, %cst_12 {dimension_numbers = #tpu.dot_dimension_numbers<[1], [0], [0], [1], [0, 0, 1, 1], [], []>} : vector<8x16xf32>, vector<16x384xf32>, vector<8x384xf32> -> vector<8x384xf32>
    %c0_13 = arith.constant 0 : index
    %c0_14 = arith.constant 0 : index
    %36 = vector.load %arg1[%c0_13, %c0_14] : memref<8x4xf32, #tpu.memory_space<vmem>>, vector<8x4xf32>
    %c0_15 = arith.constant 0 : index
    %c0_16 = arith.constant 0 : index
    %37 = vector.load %arg4[%c0_15, %c0_16] : memref<4x384xf32, #tpu.memory_space<vmem>>, vector<4x384xf32>
    %cst_17 = arith.constant dense<0.000000e+00> : vector<8x384xf32>
    %38 = tpu.matmul %36, %37, %cst_17 {dimension_numbers = #tpu.dot_dimension_numbers<[1], [0], [0], [1], [0, 0, 1, 1], [], []>} : vector<8x4xf32>, vector<4x384xf32>, vector<8x384xf32> -> vector<8x384xf32>
    %39 = arith.addf %35, %38 : vector<8x384xf32>
    %40 = vector.broadcast %32 : vector<8x1xf32> to vector<8x384xf32>
    %41 = vector.broadcast %1 : vector<1x384xf32> to vector<8x384xf32>
    %42 = arith.mulf %40, %41 : vector<8x384xf32>
    %43 = arith.addf %39, %42 : vector<8x384xf32>
    %44 = vector.broadcast %2 : vector<1x384xf32> to vector<8x384xf32>
    %45 = arith.addf %43, %44 : vector<8x384xf32>
    %cst_18 = arith.constant dense<0.000000e+00> : vector<384xf32>
    %46 = vector.multi_reduction <add>, %45, %cst_18 [0] : vector<8x384xf32> to vector<384xf32>
    %47 = vector.shape_cast %46 : vector<384xf32> to vector<1x384xf32>
    %cst_19 = arith.constant 8.000000e+00 : f32
    %48 = vector.broadcast %cst_19 : f32 to vector<1x384xf32>
    %49 = arith.divf %47, %48 : vector<1x384xf32>
    %50 = arith.mulf %45, %45 : vector<8x384xf32>
    %cst_20 = arith.constant dense<0.000000e+00> : vector<384xf32>
    %51 = vector.multi_reduction <add>, %50, %cst_20 [0] : vector<8x384xf32> to vector<384xf32>
    %52 = vector.shape_cast %51 : vector<384xf32> to vector<1x384xf32>
    %cst_21 = arith.constant 8.000000e+00 : f32
    %53 = vector.broadcast %cst_21 : f32 to vector<1x384xf32>
    %54 = arith.divf %52, %53 : vector<1x384xf32>
    %55 = arith.mulf %49, %49 : vector<1x384xf32>
    %56 = arith.subf %54, %55 : vector<1x384xf32>
    %cst_22 = arith.constant 0.000000e+00 : f32
    %57 = vector.broadcast %cst_22 : f32 to vector<1x384xf32>
    %58 = arith.maximumf %56, %57 : vector<1x384xf32>
    %cst_23 = arith.constant 9.99999974E-6 : f32
    %59 = vector.broadcast %cst_23 : f32 to vector<1x384xf32>
    %60 = arith.addf %58, %59 : vector<1x384xf32>
    %61 = math.rsqrt %60 : vector<1x384xf32>
    %62 = arith.mulf %61, %3 : vector<1x384xf32>
    %63 = vector.broadcast %62 : vector<1x384xf32> to vector<8x384xf32>
    %64 = arith.mulf %45, %63 : vector<8x384xf32>
    %65 = arith.mulf %49, %62 : vector<1x384xf32>
    %66 = arith.subf %4, %65 : vector<1x384xf32>
    %67 = vector.broadcast %66 : vector<1x384xf32> to vector<8x384xf32>
    %68 = arith.addf %64, %67 : vector<8x384xf32>
    %cst_24 = arith.constant 0.000000e+00 : f32
    %69 = vector.broadcast %cst_24 : f32 to vector<8x384xf32>
    %70 = arith.maximumf %68, %69 : vector<8x384xf32>
    %c0_25 = arith.constant 0 : index
    %c0_26 = arith.constant 0 : index
    %71 = vector.load %arg5[%c0_25, %c0_26] : memref<384x384xf32, #tpu.memory_space<vmem>>, vector<384x384xf32>
    %cst_27 = arith.constant dense<0.000000e+00> : vector<8x384xf32>
    %72 = tpu.matmul %70, %71, %cst_27 {dimension_numbers = #tpu.dot_dimension_numbers<[1], [0], [0], [1], [0, 0, 1, 1], [], []>} : vector<8x384xf32>, vector<384x384xf32>, vector<8x384xf32> -> vector<8x384xf32>
    %73 = vector.broadcast %5 : vector<1x384xf32> to vector<8x384xf32>
    %74 = arith.addf %72, %73 : vector<8x384xf32>
    %cst_28 = arith.constant dense<0.000000e+00> : vector<384xf32>
    %75 = vector.multi_reduction <add>, %74, %cst_28 [0] : vector<8x384xf32> to vector<384xf32>
    %76 = vector.shape_cast %75 : vector<384xf32> to vector<1x384xf32>
    %cst_29 = arith.constant 8.000000e+00 : f32
    %77 = vector.broadcast %cst_29 : f32 to vector<1x384xf32>
    %78 = arith.divf %76, %77 : vector<1x384xf32>
    %79 = arith.mulf %74, %74 : vector<8x384xf32>
    %cst_30 = arith.constant dense<0.000000e+00> : vector<384xf32>
    %80 = vector.multi_reduction <add>, %79, %cst_30 [0] : vector<8x384xf32> to vector<384xf32>
    %81 = vector.shape_cast %80 : vector<384xf32> to vector<1x384xf32>
    %cst_31 = arith.constant 8.000000e+00 : f32
    %82 = vector.broadcast %cst_31 : f32 to vector<1x384xf32>
    %83 = arith.divf %81, %82 : vector<1x384xf32>
    %84 = arith.mulf %78, %78 : vector<1x384xf32>
    %85 = arith.subf %83, %84 : vector<1x384xf32>
    %cst_32 = arith.constant 0.000000e+00 : f32
    %86 = vector.broadcast %cst_32 : f32 to vector<1x384xf32>
    %87 = arith.maximumf %85, %86 : vector<1x384xf32>
    %cst_33 = arith.constant 9.99999974E-6 : f32
    %88 = vector.broadcast %cst_33 : f32 to vector<1x384xf32>
    %89 = arith.addf %87, %88 : vector<1x384xf32>
    %90 = math.rsqrt %89 : vector<1x384xf32>
    %91 = arith.mulf %90, %6 : vector<1x384xf32>
    %92 = vector.broadcast %91 : vector<1x384xf32> to vector<8x384xf32>
    %93 = arith.mulf %74, %92 : vector<8x384xf32>
    %94 = arith.mulf %78, %91 : vector<1x384xf32>
    %95 = arith.subf %7, %94 : vector<1x384xf32>
    %96 = vector.broadcast %95 : vector<1x384xf32> to vector<8x384xf32>
    %97 = arith.addf %93, %96 : vector<8x384xf32>
    %cst_34 = arith.constant 0.000000e+00 : f32
    %98 = vector.broadcast %cst_34 : f32 to vector<8x384xf32>
    %99 = arith.maximumf %97, %98 : vector<8x384xf32>
    %c0_35 = arith.constant 0 : index
    %c0_36 = arith.constant 0 : index
    %100 = vector.load %arg6[%c0_35, %c0_36] : memref<384x384xf32, #tpu.memory_space<vmem>>, vector<384x384xf32>
    %cst_37 = arith.constant dense<0.000000e+00> : vector<8x384xf32>
    %101 = tpu.matmul %99, %100, %cst_37 {dimension_numbers = #tpu.dot_dimension_numbers<[1], [0], [0], [1], [0, 0, 1, 1], [], []>} : vector<8x384xf32>, vector<384x384xf32>, vector<8x384xf32> -> vector<8x384xf32>
    %102 = vector.broadcast %8 : vector<1x384xf32> to vector<8x384xf32>
    %103 = arith.addf %101, %102 : vector<8x384xf32>
    %cst_38 = arith.constant dense<0.000000e+00> : vector<384xf32>
    %104 = vector.multi_reduction <add>, %103, %cst_38 [0] : vector<8x384xf32> to vector<384xf32>
    %105 = vector.shape_cast %104 : vector<384xf32> to vector<1x384xf32>
    %cst_39 = arith.constant 8.000000e+00 : f32
    %106 = vector.broadcast %cst_39 : f32 to vector<1x384xf32>
    %107 = arith.divf %105, %106 : vector<1x384xf32>
    %108 = arith.mulf %103, %103 : vector<8x384xf32>
    %cst_40 = arith.constant dense<0.000000e+00> : vector<384xf32>
    %109 = vector.multi_reduction <add>, %108, %cst_40 [0] : vector<8x384xf32> to vector<384xf32>
    %110 = vector.shape_cast %109 : vector<384xf32> to vector<1x384xf32>
    %cst_41 = arith.constant 8.000000e+00 : f32
    %111 = vector.broadcast %cst_41 : f32 to vector<1x384xf32>
    %112 = arith.divf %110, %111 : vector<1x384xf32>
    %113 = arith.mulf %107, %107 : vector<1x384xf32>
    %114 = arith.subf %112, %113 : vector<1x384xf32>
    %cst_42 = arith.constant 0.000000e+00 : f32
    %115 = vector.broadcast %cst_42 : f32 to vector<1x384xf32>
    %116 = arith.maximumf %114, %115 : vector<1x384xf32>
    %cst_43 = arith.constant 9.99999974E-6 : f32
    %117 = vector.broadcast %cst_43 : f32 to vector<1x384xf32>
    %118 = arith.addf %116, %117 : vector<1x384xf32>
    %119 = math.rsqrt %118 : vector<1x384xf32>
    %120 = arith.mulf %119, %9 : vector<1x384xf32>
    %121 = vector.broadcast %120 : vector<1x384xf32> to vector<8x384xf32>
    %122 = arith.mulf %103, %121 : vector<8x384xf32>
    %123 = arith.mulf %107, %120 : vector<1x384xf32>
    %124 = arith.subf %10, %123 : vector<1x384xf32>
    %125 = vector.broadcast %124 : vector<1x384xf32> to vector<8x384xf32>
    %126 = arith.addf %122, %125 : vector<8x384xf32>
    %cst_44 = arith.constant 0.000000e+00 : f32
    %127 = vector.broadcast %cst_44 : f32 to vector<8x384xf32>
    %128 = arith.maximumf %126, %127 : vector<8x384xf32>
    %c0_45 = arith.constant 0 : index
    %c0_46 = arith.constant 0 : index
    %129 = vector.load %arg7[%c0_45, %c0_46] : memref<384x128xf32, #tpu.memory_space<vmem>>, vector<384x128xf32>
    %cst_47 = arith.constant dense<0.000000e+00> : vector<8x128xf32>
    %130 = tpu.matmul %128, %129, %cst_47 {dimension_numbers = #tpu.dot_dimension_numbers<[1], [0], [0], [1], [0, 0, 1, 1], [], []>} : vector<8x384xf32>, vector<384x128xf32>, vector<8x128xf32> -> vector<8x128xf32>
    %131 = vector.broadcast %11 : vector<1x128xf32> to vector<8x128xf32>
    %132 = arith.addf %130, %131 : vector<8x128xf32>
    %c0_48 = arith.constant 0 : index
    %c0_49 = arith.constant 0 : index
    %133 = vector.load %arg9[%c0_48, %c0_49] : memref<8x128xf32, #tpu.memory_space<vmem>>, vector<8x128xf32>
    tpu.vector_store %arg9[%c0_48, %c0_49], %132 {strides = array<i32>} : memref<8x128xf32, #tpu.memory_space<vmem>>, vector<8x128xf32>,
    return
  }
}

</mosaic_0001>

<llo_original>
// kernel: tpu_custom_call.1
$region0: #{tpu_custom_call.1}
  #allocation0 [shape = 'u32[]', space=smem, size = 0x4, offset = 0x4, fixed_abs, tag = 'smem constant byte address 0x4 - core index']
  #allocation1 [shape = 'u32[144,128]{1,0:T(1,128)}', space=vmem, size = 0x12000, scoped, tag = 'internal scratch']
  %s0 = inlined_call_operand.hbm [shape: f32[8,16], index: 0, kind: input, shape index: {}]
  %s1 = inlined_call_operand.vmem [shape: f32[8,4], index: 1, kind: input, shape index: {}]
  %s2 = inlined_call_operand.vmem [shape: f32[8,1], index: 2, kind: input, shape index: {}]
  %s3 = inlined_call_operand.hbm [shape: f32[16,384], index: 3, kind: input, shape index: {}]
  %s4 = inlined_call_operand.hbm [shape: f32[4,384], index: 4, kind: input, shape index: {}]
  %s5 = inlined_call_operand.hbm [shape: f32[384,384], index: 5, kind: input, shape index: {}]
  %s6 = inlined_call_operand.hbm [shape: f32[384,384], index: 6, kind: input, shape index: {}]
  %s7 = inlined_call_operand.hbm [shape: f32[384,128], index: 7, kind: input, shape index: {}]
  %s8 = inlined_call_operand.vmem [shape: f32[11,384], index: 8, kind: input, shape index: {}]
  %s9 = inlined_call_operand.hbm [shape: f32[8,128], index: 9, kind: output, shape index: {}]
  %s10 = sld [smem:[#allocation0]]
  $region70: #{tpu_custom_call.1} parent=0
    _
  %s12 = ssub.s32 1, %s10
  %s13 = scalar_select 0, %s12, %s10
  $region1: #{tpu_custom_call.1} parent=0
    #allocation2 [shape = 'u8[4096]{0}', space=vmem, size = 0x1000, scoped, tag = 'input window, operand 0, single buffered']
    #allocation3 [shape = 's32[1]{0}', space=sflag, size = 0x4, scoped, tag = 'scoped memory for tpu_custom_call.1']
    #allocation4 [shape = 's32[1]{0}', space=sflag, size = 0x4, scoped, tag = 'scoped memory for tpu_custom_call.1']
    #allocation5 [shape = 'u8[24576]{0}', space=vmem, size = 0x6000, scoped, tag = 'input window, operand 3, single buffered']
    #allocation6 [shape = 's32[1]{0}', space=sflag, size = 0x4, scoped, tag = 'scoped memory for tpu_custom_call.1']
    #allocation7 [shape = 'u8[6144]{0}', space=vmem, size = 0x1800, scoped, tag = 'input window, operand 4, single buffered']
    #allocation8 [shape = 'u8[589824]{0}', space=vmem, size = 0x90000, scoped, tag = 'input window, operand 5, single buffered']
    #allocation9 [shape = 's32[1]{0}', space=sflag, size = 0x4, scoped, tag = 'scoped memory for tpu_custom_call.1']
    #allocation10 [shape = 'u8[589824]{0}', space=vmem, size = 0x90000, scoped, tag = 'input window, operand 6, single buffered']
    #allocation11 [shape = 'u8[196608]{0}', space=vmem, size = 0x30000, scoped, tag = 'input window, operand 7, single buffered']
    #allocation12 [shape = 's32[1]{0}', space=sflag, size = 0x4, scoped, tag = 'scoped memory for tpu_custom_call.1']
    #allocation13 [shape = 'u8[4096]{0}', space=vmem, size = 0x1000, scoped, tag = 'output window, operand 0, single buffered']
    %14 = vsyncpa [#allocation3], 0
    %15 = vsyncpa [#allocation6], 0
    %16 = vsyncpa [#allocation9], 0
    %17 = vsyncpa [#allocation12], 0
    %18 = vsyncpa [#allocation4], 0
    // Predicated region
    $region2: #{tpu_custom_call.1} parent=1 // pred_check
      _
    $region3: #{tpu_custom_call.1} parent=1 // pred_check_branch
      %20 = sbr.rel (0) target = $region5
    $region4: #{tpu_custom_call.1} parent=1 // pred_region
      %s22 = ssub.s32 128, 128
      %23 = vsyncadd [#allocation3], %s22
      %s25 = sshll.u32 [#allocation2], 4
      %s26 = int_to_ptr.vmem [resolvable:$true] %s25
      %28 = dma.hbm_to_vmem [thread:$0]  %s0, 128, %s26, [#allocation3]
    $region5: #{tpu_custom_call.1} parent=1 // pred_fallthru
      _
    // Predicated region
    $region6: #{tpu_custom_call.1} parent=1 // pred_check
      _
    $region7: #{tpu_custom_call.1} parent=1 // pred_check_branch
      %30 = sbr.rel (0) target = $region9
    $region8: #{tpu_custom_call.1} parent=1 // pred_region
      _
    $region9: #{tpu_custom_call.1} parent=1 // pred_fallthru
      _
    // Predicated region
    $region10: #{tpu_custom_call.1} parent=1 // pred_check
      _
    $region11: #{tpu_custom_call.1} parent=1 // pred_check_branch
      %32 = sbr.rel (0) target = $region13
    $region12: #{tpu_custom_call.1} parent=1 // pred_region
      _
    $region13: #{tpu_custom_call.1} parent=1 // pred_fallthru
      _
    // Predicated region
    $region14: #{tpu_custom_call.1} parent=1 // pred_check
      _
    $region15: #{tpu_custom_call.1} parent=1 // pred_check_branch
      %34 = sbr.rel (0) target = $region17
    $region16: #{tpu_custom_call.1} parent=1 // pred_region
      %s36 = ssub.s32 768, 768
      %37 = vsyncadd [#allocation6], %s36
      %s38 = sshll.u32 [#allocation5], 4
      %s39 = int_to_ptr.vmem [resolvable:$true] %s38
      %44 = dma.hbm_to_vmem [thread:$0]  %s3, 768, %s39, [#allocation6], 384, 384, 24
    $region17: #{tpu_custom_call.1} parent=1 // pred_fallthru
      _
    // Predicated region
    $region18: #{tpu_custom_call.1} parent=1 // pred_check
      _
    $region19: #{tpu_custom_call.1} parent=1 // pred_check_branch
      %46 = sbr.rel (0) target = $region21
    $region20: #{tpu_custom_call.1} parent=1 // pred_region
      %s48 = ssub.s32 192, 192
      %49 = vsyncadd [#allocation6], %s48
      %s51 = sshll.u32 [#allocation7], 4
      %s52 = int_to_ptr.vmem [resolvable:$true] %s51
      %54 = dma.hbm_to_vmem [thread:$0]  %s4, 192, %s52, [#allocation6]
    $region21: #{tpu_custom_call.1} parent=1 // pred_fallthru
      _
    // Predicated region
    $region22: #{tpu_custom_call.1} parent=1 // pred_check
      _
    $region23: #{tpu_custom_call.1} parent=1 // pred_check_branch
      %56 = sbr.rel (0) target = $region25
    $region24: #{tpu_custom_call.1} parent=1 // pred_region
      %s58 = ssub.s32 18432, 18432
      %59 = vsyncadd [#allocation9], %s58
      %s60 = sshll.u32 [#allocation8], 4
      %s61 = int_to_ptr.vmem [resolvable:$true] %s60
      %66 = dma.hbm_to_vmem [thread:$0]  %s5, 18432, %s61, [#allocation9], 384, 384, 24
    $region25: #{tpu_custom_call.1} parent=1 // pred_fallthru
      _
    // Predicated region
    $region26: #{tpu_custom_call.1} parent=1 // pred_check
      _
    $region27: #{tpu_custom_call.1} parent=1 // pred_check_branch
      %68 = sbr.rel (0) target = $region29
    $region28: #{tpu_custom_call.1} parent=1 // pred_region
      %s70 = ssub.s32 18432, 18432
      %71 = vsyncadd [#allocation9], %s70
      %s72 = sshll.u32 [#allocation10], 4
      %s73 = int_to_ptr.vmem [resolvable:$true] %s72
      %78 = dma.hbm_to_vmem [thread:$0]  %s6, 18432, %s73, [#allocation9], 384, 384, 24
    $region29: #{tpu_custom_call.1} parent=1 // pred_fallthru
      _
    // Predicated region
    $region30: #{tpu_custom_call.1} parent=1 // pred_check
      _
    $region31: #{tpu_custom_call.1} parent=1 // pred_check_branch
      %80 = sbr.rel (0) target = $region33
    $region32: #{tpu_custom_call.1} parent=1 // pred_region
      %s82 = ssub.s32 6144, 6144
      %83 = vsyncadd [#allocation12], %s82
      %s84 = sshll.u32 [#allocation11], 4
      %s85 = int_to_ptr.vmem [resolvable:$true] %s84
      %90 = dma.hbm_to_vmem [thread:$0]  %s7, 6144, %s85, [#allocation12], 128, 128, 8
    $region33: #{tpu_custom_call.1} parent=1 // pred_fallthru
      _
    // Predicated region
    $region34: #{tpu_custom_call.1} parent=1 // pred_check
      _
    $region35: #{tpu_custom_call.1} parent=1 // pred_check_branch
      %92 = sbr.rel (0) target = $region37
    $region36: #{tpu_custom_call.1} parent=1 // pred_region
      _
    $region37: #{tpu_custom_call.1} parent=1 // pred_fallthru
      _
    // Predicated region
    $region38: #{tpu_custom_call.1} parent=1 // pred_check
      _
    $region39: #{tpu_custom_call.1} parent=1 // pred_check_branch
      %94 = sbr.rel (0) target = $region41
    $region40: #{tpu_custom_call.1} parent=1 // pred_region
      %95 = dma.done [#allocation3], 128
    $region41: #{tpu_custom_call.1} parent=1 // pred_fallthru
      _
    // Predicated region
    $region42: #{tpu_custom_call.1} parent=1 // pred_check
      _
    $region43: #{tpu_custom_call.1} parent=1 // pred_check_branch
      %97 = sbr.rel (0) target = $region45
    $region44: #{tpu_custom_call.1} parent=1 // pred_region
      %98 = dma.done [#allocation6], 768
    $region45: #{tpu_custom_call.1} parent=1 // pred_fallthru
      _
    // Predicated region
    $region46: #{tpu_custom_call.1} parent=1 // pred_check
      _
    $region47: #{tpu_custom_call.1} parent=1 // pred_check_branch
      %100 = sbr.rel (0) target = $region49
    $region48: #{tpu_custom_call.1} parent=1 // pred_region
      %101 = dma.done [#allocation6], 192
    $region49: #{tpu_custom_call.1} parent=1 // pred_fallthru
      _
    // Predicated region
    $region50: #{tpu_custom_call.1} parent=1 // pred_check
      _
    $region51: #{tpu_custom_call.1} parent=1 // pred_check_branch
      %103 = sbr.rel (0) target = $region53
    $region52: #{tpu_custom_call.1} parent=1 // pred_region
      %104 = dma.done [#allocation9], 18432
    $region53: #{tpu_custom_call.1} parent=1 // pred_fallthru
      _
    // Predicated region
    $region54: #{tpu_custom_call.1} parent=1 // pred_check
      _
    $region55: #{tpu_custom_call.1} parent=1 // pred_check_branch
      %106 = sbr.rel (0) target = $region57
    $region56: #{tpu_custom_call.1} parent=1 // pred_region
      %107 = dma.done [#allocation9], 18432
    $region57: #{tpu_custom_call.1} parent=1 // pred_fallthru
      _
    // Predicated region
    $region58: #{tpu_custom_call.1} parent=1 // pred_check
      _
    $region59: #{tpu_custom_call.1} parent=1 // pred_check_branch
      %109 = sbr.rel (0) target = $region61
    $region60: #{tpu_custom_call.1} parent=1 // pred_region
      %110 = dma.done [#allocation12], 6144
    $region61: #{tpu_custom_call.1} parent=1 // pred_fallthru
      _
    %v111 = vld [vmem:[%s8] sm:$0xff]
    %v112 = vld [vmem:[%s8 + $0x8] sm:$0xff]
    %v113 = vld [vmem:[%s8 + $0x10] sm:$0xff]
    %v114 = vld [vmem:[%s8 + $0x18] sm:$0x7]
    %v115 = vld [vmem:[%s8 + $0x20] sm:$0x7]
    %v116 = vld [vmem:[%s8 + $0x28] sm:$0x7]
    %v117 = vld [vmem:[%s2] sm:$0xff]
    %vm118 = vcmask 7168
    %v119 = vsel %vm118, %v117, 0.0
    %v120 = vrot.slane %v119, 4
    %v121 = vadd.f32 %v119, %v120
    %v122 = vrot.slane %v121, 2
    %v123 = vadd.f32 %v121, %v122
    %v124 = vrot.slane %v123, 1
    %v125 = vadd.f32 %v123, %v124
    %v126 = vrcp.pop 8.0
    %v127 = vmul.f32 %v125, %v126
    %v128 = vmul.f32 %v117, %v117
    %v129 = vsel %vm118, %v128, 0.0
    %v130 = vrot.slane %v129, 4
    %v131 = vadd.f32 %v129, %v130
    %v132 = vrot.slane %v131, 2
    %v133 = vadd.f32 %v131, %v132
    %v134 = vrot.slane %v133, 1
    %v135 = vadd.f32 %v133, %v134
    %v136 = vmul.f32 %v135, %v126
    %v137 = vmul.f32 %v127, %v127
    %v138 = vsub.f32 %v136, %v137
    %v139 = vmax.f32 %v138, 0.0
    %v140 = vsub.f32 %v117, %v127
    %v141 = vadd.f32 %v139, 1e-05
    %v142 = vrsqrt.pop %v141
    %v143 = vmul.f32 %v140, %v142
    %v144 = vld [vmem:[#allocation2] sm:$0xff]
    %v145 = vld [vmem:[#allocation5] sm:$0xff]
    %v146 = vld [vmem:[#allocation5 + $0x8] sm:$0xff]
    %v147 = vld [vmem:[#allocation5 + $0x10] sm:$0xff]
    %v148 = vld [vmem:[#allocation5 + $0x18] sm:$0xff]
    %v149 = vld [vmem:[#allocation5 + $0x20] sm:$0xff]
    %v150 = vld [vmem:[#allocation5 + $0x28] sm:$0xff]
    %v151 = vld [vmem:[%s1] sm:$0xff]
    %v152 = vld [vmem:[#allocation7] sm:$0xff]
    %v153 = vld [vmem:[#allocation7 + $0x8] sm:$0xf]
    %v156 = vcombine.high %v152, %v152
    %vm157 = vcmask 31744
    %v159 = vsel %vm157, %v151, 0
    %vm161 = vcmask 1043456
    %v162 = vsel %vm161, %v152, 0
    %v164 = vsel %vm161, %v156, 0
    %v166 = vsel %vm161, %v153, 0
    %168 = vmatprep.subr.mxu0 %v164
    %169 = vmatpush1.msra.mxu0 %v162
    %170 = vmatprep.subr.mxu0 0.0
    %171 = vmatpush1.msra.mxu0 0.0
    %172 = vmatprep.subr.mxu0 0.0
    %173 = vmatpush1.msra.mxu0 0.0
    %174 = vmatprep.subr.mxu0 0.0
    %175 = vmatpush1.msra.mxu0 0.0
    %176 = vmatprep.subr.mxu0 0.0
    %177 = vmatpush1.msra.mxu0 0.0
    %178 = vmatprep.subr.mxu0 0.0
    %179 = vmatpush1.msra.mxu0 0.0
    %180 = vmatprep.subr.mxu0 0.0
    %181 = vmatpush1.msra.mxu0 0.0
    %182 = vmatprep.subr.mxu0 0.0
    %183 = vmatpush1.msra.mxu0 0.0
    %184 = vmatprep.subr.mxu0 0.0
    %185 = vmatpush1.msra.mxu0 0.0
    %186 = vmatprep.subr.mxu0 0.0
    %187 = vmatpush1.msra.mxu0 0.0
    %188 = vmatprep.subr.mxu0 0.0
    %189 = vmatpush1.msra.mxu0 0.0
    %190 = vmatprep.subr.mxu0 0.0
    %191 = vmatpush1.msra.mxu0 0.0
    %192 = vmatprep.subr.mxu0 0.0
    %193 = vmatpush1.msra.mxu0 0.0
    %194 = vmatprep.subr.mxu0 0.0
    %195 = vmatpush1.msra.mxu0 0.0
    %196 = vmatprep.subr.mxu0 0.0
    %197 = vmatpush1.msra.mxu0 0.0
    %198 = vmatprep.subr.mxu0 0.0
    %199 = vmatpush1.msra.mxu0 0.0
    %200 = vmatprep.subr.mxu0 0.0
    %201 = vmatpush1.msra.mxu0 0.0
    %202 = vmatprep.subr.mxu0 0.0
    %203 = vmatpush1.msra.mxu0 0.0
    %204 = vmatprep.subr.mxu0 0.0
    %205 = vmatpush1.msra.mxu0 0.0
    %206 = vmatprep.subr.mxu0 0.0
    %207 = vmatpush1.msra.mxu0 0.0
    %208 = vmatprep.subr.mxu0 0.0
    %209 = vmatpush1.msra.mxu0 0.0
    %210 = vmatprep.subr.mxu0 0.0
    %211 = vmatpush1.msra.mxu0 0.0
    %212 = vmatprep.subr.mxu0 0.0
    %213 = vmatpush1.msra.mxu0 0.0
    %214 = vmatprep.subr.mxu0 0.0
    %215 = vmatpush1.msra.mxu0 0.0
    %216 = vmatprep.subr.mxu0 0.0
    %217 = vmatpush1.msra.mxu0 0.0
    %218 = vmatprep.subr.mxu0 0.0
    %219 = vmatpush1.msra.mxu0 0.0
    %220 = vmatprep.subr.mxu0 0.0
    %221 = vmatpush1.msra.mxu0 0.0
    %222 = vmatprep.subr.mxu0 0.0
    %223 = vmatpush1.msra.mxu0 0.0
    %224 = vmatprep.subr.mxu0 0.0
    %225 = vmatpush1.msra.mxu0 0.0
    %226 = vmatprep.subr.mxu0 0.0
    %227 = vmatpush1.msra.mxu0 0.0
    %228 = vmatprep.subr.mxu0 0.0
    %229 = vmatpush1.msra.mxu0 0.0
    %230 = vmatprep.subr.mxu0 0.0
    %231 = vmatpush1.msra.mxu0 0.0
    %232 = vmatprep.mubr.f32.mxu0 0.0
    %233 = vmatmul.mubr.f32.gmra.mrb[0].mxu0 %v159
    %v234 = vpop.f32.mrb[0].mxu0
    %v235 = vadd.f32 0.0, %v234
    %v236 = vpop.f32.mrb[0].mxu0
    %v237 = vadd.f32 0.0, %v236
    %238 = vdwg.mxu0
    %239 = vmatprep.subr.mxu0 0.0
    %240 = vmatpush1.msra.mxu0 %v166
    %241 = vmatprep.subr.mxu0 0.0
    %242 = vmatpush1.msra.mxu0 0.0
    %243 = vmatprep.subr.mxu0 0.0
    %244 = vmatpush1.msra.mxu0 0.0
    %245 = vmatprep.subr.mxu0 0.0
    %246 = vmatpush1.msra.mxu0 0.0
    %247 = vmatprep.subr.mxu0 0.0
    %248 = vmatpush1.msra.mxu0 0.0
    %249 = vmatprep.subr.mxu0 0.0
    %250 = vmatpush1.msra.mxu0 0.0
    %251 = vmatprep.subr.mxu0 0.0
    %252 = vmatpush1.msra.mxu0 0.0
    %253 = vmatprep.subr.mxu0 0.0
    %254 = vmatpush1.msra.mxu0 0.0
    %255 = vmatprep.subr.mxu0 0.0
    %256 = vmatpush1.msra.mxu0 0.0
    %257 = vmatprep.subr.mxu0 0.0
    %258 = vmatpush1.msra.mxu0 0.0
    %259 = vmatprep.subr.mxu0 0.0
    %260 = vmatpush1.msra.mxu0 0.0
    %261 = vmatprep.subr.mxu0 0.0
    %262 = vmatpush1.msra.mxu0 0.0
    %263 = vmatprep.subr.mxu0 0.0
    %264 = vmatpush1.msra.mxu0 0.0
    %265 = vmatprep.subr.mxu0 0.0
    %266 = vmatpush1.msra.mxu0 0.0
    %267 = vmatprep.subr.mxu0 0.0
    %268 = vmatpush1.msra.mxu0 0.0
    %269 = vmatprep.subr.mxu0 0.0
    %270 = vmatpush1.msra.mxu0 0.0
    %271 = vmatprep.subr.mxu0 0.0
    %272 = vmatpush1.msra.mxu0 0.0
    %273 = vmatprep.subr.mxu0 0.0
    %274 = vmatpush1.msra.mxu0 0.0
    %275 = vmatprep.subr.mxu0 0.0
    %276 = vmatpush1.msra.mxu0 0.0
    %277 = vmatprep.subr.mxu0 0.0
    %278 = vmatpush1.msra.mxu0 0.0
    %279 = vmatprep.subr.mxu0 0.0
    %280 = vmatpush1.msra.mxu0 0.0
    %281 = vmatprep.subr.mxu0 0.0
    %282 = vmatpush1.msra.mxu0 0.0
    %283 = vmatprep.subr.mxu0 0.0
    %284 = vmatpush1.msra.mxu0 0.0
    %285 = vmatprep.subr.mxu0 0.0
    %286 = vmatpush1.msra.mxu0 0.0
    %287 = vmatprep.subr.mxu0 0.0
    %288 = vmatpush1.msra.mxu0 0.0
    %289 = vmatprep.subr.mxu0 0.0
    %290 = vmatpush1.msra.mxu0 0.0
    %291 = vmatprep.subr.mxu0 0.0
    %292 = vmatpush1.msra.mxu0 0.0
    %293 = vmatprep.subr.mxu0 0.0
    %294 = vmatpush1.msra.mxu0 0.0
    %295 = vmatprep.subr.mxu0 0.0
    %296 = vmatpush1.msra.mxu0 0.0
    %297 = vmatprep.subr.mxu0 0.0
    %298 = vmatpush1.msra.mxu0 0.0
    %299 = vmatprep.subr.mxu0 0.0
    %300 = vmatpush1.msra.mxu0 0.0
    %301 = vmatprep.subr.mxu0 0.0
    %302 = vmatpush1.msra.mxu0 0.0
    %303 = vmatprep.mubr.f32.mxu0 0.0
    %304 = vmatmul.mubr.f32.gmra.mrb[0].mxu0 %v159
    %v305 = vpop.f32.mrb[0].mxu0
    %v306 = vadd.f32 0.0, %v305
    %v307 = vpop.f32.mrb[0].mxu0
    %308 = vdwg.mxu0
    %vm309 = vcmask 130048
    %v311 = vsel %vm309, %v144, 0
    %313 = vmatprep.subr.mxu0 %v146
    %314 = vmatpush1.msra.mxu0 %v145
    %315 = vmatprep.subr.mxu0 %v149
    %316 = vmatpush1.msra.mxu0 %v148
    %317 = vmatprep.subr.mxu0 0.0
    %318 = vmatpush1.msra.mxu0 0.0
    %319 = vmatprep.subr.mxu0 0.0
    %320 = vmatpush1.msra.mxu0 0.0
    %321 = vmatprep.subr.mxu0 0.0
    %322 = vmatpush1.msra.mxu0 0.0
    %323 = vmatprep.subr.mxu0 0.0
    %324 = vmatpush1.msra.mxu0 0.0
    %325 = vmatprep.subr.mxu0 0.0
    %326 = vmatpush1.msra.mxu0 0.0
    %327 = vmatprep.subr.mxu0 0.0
    %328 = vmatpush1.msra.mxu0 0.0
    %329 = vmatprep.subr.mxu0 0.0
    %330 = vmatpush1.msra.mxu0 0.0
    %331 = vmatprep.subr.mxu0 0.0
    %332 = vmatpush1.msra.mxu0 0.0
    %333 = vmatprep.subr.mxu0 0.0
    %334 = vmatpush1.msra.mxu0 0.0
    %335 = vmatprep.subr.mxu0 0.0
    %336 = vmatpush1.msra.mxu0 0.0
    %337 = vmatprep.subr.mxu0 0.0
    %338 = vmatpush1.msra.mxu0 0.0
    %339 = vmatprep.subr.mxu0 0.0
    %340 = vmatpush1.msra.mxu0 0.0
    %341 = vmatprep.subr.mxu0 0.0
    %342 = vmatpush1.msra.mxu0 0.0
    %343 = vmatprep.subr.mxu0 0.0
    %344 = vmatpush1.msra.mxu0 0.0
    %345 = vmatprep.subr.mxu0 0.0
    %346 = vmatpush1.msra.mxu0 0.0
    %347 = vmatprep.subr.mxu0 0.0
    %348 = vmatpush1.msra.mxu0 0.0
    %349 = vmatprep.subr.mxu0 0.0
    %350 = vmatpush1.msra.mxu0 0.0
    %351 = vmatprep.subr.mxu0 0.0
    %352 = vmatpush1.msra.mxu0 0.0
    %353 = vmatprep.subr.mxu0 0.0
    %354 = vmatpush1.msra.mxu0 0.0
    %355 = vmatprep.subr.mxu0 0.0
    %356 = vmatpush1.msra.mxu0 0.0
    %357 = vmatprep.subr.mxu0 0.0
    %358 = vmatpush1.msra.mxu0 0.0
    %359 = vmatprep.subr.mxu0 0.0
    %360 = vmatpush1.msra.mxu0 0.0
    %361 = vmatprep.subr.mxu0 0.0
    %362 = vmatpush1.msra.mxu0 0.0
    %363 = vmatprep.subr.mxu0 0.0
    %364 = vmatpush1.msra.mxu0 0.0
    %365 = vmatprep.subr.mxu0 0.0
    %366 = vmatpush1.msra.mxu0 0.0
    %367 = vmatprep.subr.mxu0 0.0
    %368 = vmatpush1.msra.mxu0 0.0
    %369 = vmatprep.subr.mxu0 0.0
    %370 = vmatpush1.msra.mxu0 0.0
    %371 = vmatprep.subr.mxu0 0.0
    %372 = vmatpush1.msra.mxu0 0.0
    %373 = vmatprep.subr.mxu0 0.0
    %374 = vmatpush1.msra.mxu0 0.0
    %375 = vmatprep.subr.mxu0 0.0
    %376 = vmatpush1.msra.mxu0 0.0
    %377 = vmatprep.mubr.f32.mxu0 0.0
    %378 = vmatmul.mubr.f32.gmra.mrb[0].mxu0 %v311
    %v379 = vpop.f32.mrb[0].mxu0
    %v380 = vadd.f32 %v235, %v379
    %v381 = vpop.f32.mrb[0].mxu0
    %v382 = vadd.f32 %v237, %v381
    %383 = vdwg.mxu0
    %384 = vmatprep.subr.mxu0 0.0
    %385 = vmatpush1.msra.mxu0 %v147
    %386 = vmatprep.subr.mxu0 0.0
    %387 = vmatpush1.msra.mxu0 %v150
    %388 = vmatprep.subr.mxu0 0.0
    %389 = vmatpush1.msra.mxu0 0.0
    %390 = vmatprep.subr.mxu0 0.0
    %391 = vmatpush1.msra.mxu0 0.0
    %392 = vmatprep.subr.mxu0 0.0
    %393 = vmatpush1.msra.mxu0 0.0
    %394 = vmatprep.subr.mxu0 0.0
    %395 = vmatpush1.msra.mxu0 0.0
    %396 = vmatprep.subr.mxu0 0.0
    %397 = vmatpush1.msra.mxu0 0.0
    %398 = vmatprep.subr.mxu0 0.0
    %399 = vmatpush1.msra.mxu0 0.0
    %400 = vmatprep.subr.mxu0 0.0
    %401 = vmatpush1.msra.mxu0 0.0
    %402 = vmatprep.subr.mxu0 0.0
    %403 = vmatpush1.msra.mxu0 0.0
    %404 = vmatprep.subr.mxu0 0.0
    %405 = vmatpush1.msra.mxu0 0.0
    %406 = vmatprep.subr.mxu0 0.0
    %407 = vmatpush1.msra.mxu0 0.0
    %408 = vmatprep.subr.mxu0 0.0
    %409 = vmatpush1.msra.mxu0 0.0
    %410 = vmatprep.subr.mxu0 0.0
    %411 = vmatpush1.msra.mxu0 0.0
    %412 = vmatprep.subr.mxu0 0.0
    %413 = vmatpush1.msra.mxu0 0.0
    %414 = vmatprep.subr.mxu0 0.0
    %415 = vmatpush1.msra.mxu0 0.0
    %416 = vmatprep.subr.mxu0 0.0
    %417 = vmatpush1.msra.mxu0 0.0
    %418 = vmatprep.subr.mxu0 0.0
    %419 = vmatpush1.msra.mxu0 0.0
    %420 = vmatprep.subr.mxu0 0.0
    %421 = vmatpush1.msra.mxu0 0.0
    %422 = vmatprep.subr.mxu0 0.0
    %423 = vmatpush1.msra.mxu0 0.0
    %424 = vmatprep.subr.mxu0 0.0
    %425 = vmatpush1.msra.mxu0 0.0
    %426 = vmatprep.subr.mxu0 0.0
    %427 = vmatpush1.msra.mxu0 0.0
    %428 = vmatprep.subr.mxu0 0.0
    %429 = vmatpush1.msra.mxu0 0.0
    %430 = vmatprep.subr.mxu0 0.0
    %431 = vmatpush1.msra.mxu0 0.0
    %432 = vmatprep.subr.mxu0 0.0
    %433 = vmatpush1.msra.mxu0 0.0
    %434 = vmatprep.subr.mxu0 0.0
    %435 = vmatpush1.msra.mxu0 0.0
    %436 = vmatprep.subr.mxu0 0.0
    %437 = vmatpush1.msra.mxu0 0.0
    %438 = vmatprep.subr.mxu0 0.0
    %439 = vmatpush1.msra.mxu0 0.0
    %440 = vmatprep.subr.mxu0 0.0
    %441 = vmatpush1.msra.mxu0 0.0
    %442 = vmatprep.subr.mxu0 0.0
    %443 = vmatpush1.msra.mxu0 0.0
    %444 = vmatprep.subr.mxu0 0.0
    %445 = vmatpush1.msra.mxu0 0.0
    %446 = vmatprep.subr.mxu0 0.0
    %447 = vmatpush1.msra.mxu0 0.0
    %448 = vmatprep.mubr.f32.mxu0 0.0
    %449 = vmatmul.mubr.f32.gmra.mrb[0].mxu0 %v311
    %v450 = vpop.f32.mrb[0].mxu0
    %v451 = vadd.f32 %v306, %v450
    %v452 = vpop.f32.mrb[0].mxu0
    %453 = vdwg.mxu0
    %455 = vset.pattern.permute.xlu0 0
    %456 = vperm.xlu0 %455, %v143
    %v457 = vpop.permute.xlu0 %456
    %v459 = vlaneseq
    %v460 = vshrl.u32 %v459, 7
    %v461 = vsub.s32 0, %v460
    %v462 = vrot.slane %v111, %v461
    %v463 = vlaneseq
    %v464 = vshrl.u32 %v463, 7
    %v465 = vsub.s32 0, %v464
    %v466 = vrot.slane %v112, %v465
    %v467 = vlaneseq
    %v468 = vshrl.u32 %v467, 7
    %v469 = vsub.s32 0, %v468
    %v470 = vrot.slane %v113, %v469
    %v471 = vmul.f32 %v457, %v462
    %v472 = vmul.f32 %v457, %v466
    %v473 = vmul.f32 %v457, %v470
    %v474 = vadd.f32 %v380, %v471
    %v475 = vadd.f32 %v382, %v472
    %v476 = vadd.f32 %v451, %v473
    %v477 = vlaneseq
    %v478 = vshrl.u32 %v477, 7
    %v479 = vsub.s32 1, %v478
    %v480 = vrot.slane %v111, %v479
    %v481 = vlaneseq
    %v482 = vshrl.u32 %v481, 7
    %v483 = vsub.s32 1, %v482
    %v484 = vrot.slane %v112, %v483
    %v485 = vlaneseq
    %v486 = vshrl.u32 %v485, 7
    %v487 = vsub.s32 1, %v486
    %v488 = vrot.slane %v113, %v487
    %v489 = vadd.f32 %v474, %v480
    %v490 = vadd.f32 %v475, %v484
    %v491 = vadd.f32 %v476, %v488
    %v492 = vrot.slane %v489, 4
    %v493 = vadd.f32 %v489, %v492
    %v494 = vrot.slane %v493, 2
    %v495 = vadd.f32 %v493, %v494
    %v496 = vrot.slane %v495, 1
    %v497 = vadd.f32 %v495, %v496
    %v498 = vrot.slane %v490, 4
    %v499 = vadd.f32 %v490, %v498
    %v500 = vrot.slane %v499, 2
    %v501 = vadd.f32 %v499, %v500
    %v502 = vrot.slane %v501, 1
    %v503 = vadd.f32 %v501, %v502
    %v504 = vrot.slane %v491, 4
    %v505 = vadd.f32 %v491, %v504
    %v506 = vrot.slane %v505, 2
    %v507 = vadd.f32 %v505, %v506
    %v508 = vrot.slane %v507, 1
    %v509 = vadd.f32 %v507, %v508
    %v510 = vmul.f32 %v497, %v126
    %v511 = vmul.f32 %v503, %v126
    %v512 = vmul.f32 %v509, %v126
    %v513 = vmul.f32 %v489, %v489
    %v514 = vmul.f32 %v490, %v490
    %v515 = vmul.f32 %v491, %v491
    %v516 = vrot.slane %v513, 4
    %v517 = vadd.f32 %v513, %v516
    %v518 = vrot.slane %v517, 2
    %v519 = vadd.f32 %v517, %v518
    %v520 = vrot.slane %v519, 1
    %v521 = vadd.f32 %v519, %v520
    %v522 = vrot.slane %v514, 4
    %v523 = vadd.f32 %v514, %v522
    %v524 = vrot.slane %v523, 2
    %v525 = vadd.f32 %v523, %v524
    %v526 = vrot.slane %v525, 1
    %v527 = vadd.f32 %v525, %v526
    %v528 = vrot.slane %v515, 4
    %v529 = vadd.f32 %v515, %v528
    %v530 = vrot.slane %v529, 2
    %v531 = vadd.f32 %v529, %v530
    %v532 = vrot.slane %v531, 1
    %v533 = vadd.f32 %v531, %v532
    %v534 = vmul.f32 %v521, %v126
    %v535 = vmul.f32 %v527, %v126
    %v536 = vmul.f32 %v533, %v126
    %v537 = vmul.f32 %v510, %v510
    %v538 = vmul.f32 %v511, %v511
    %v539 = vmul.f32 %v512, %v512
    %v540 = vsub.f32 %v534, %v537
    %v541 = vsub.f32 %v535, %v538
    %v542 = vsub.f32 %v536, %v539
    %v543 = vmax.f32 %v540, 0.0
    %v544 = vmax.f32 %v541, 0.0
    %v545 = vmax.f32 %v542, 0.0
    %v546 = vadd.f32 %v543, 1e-05
    %v547 = vadd.f32 %v544, 1e-05
    %v548 = vadd.f32 %v545, 1e-05
    %v549 = vrsqrt.pop %v546
    %v550 = vrsqrt.pop %v547
    %v551 = vrsqrt.pop %v548
    %v552 = vmul.f32 %v549, %v111
    %v553 = vmul.f32 %v550, %v112
    %v554 = vmul.f32 %v551, %v113
    %v555 = vlaneseq
    %v556 = vshrl.u32 %v555, 7
    %v557 = vsub.s32 2, %v556
    %v558 = vrot.slane %v552, %v557
    %v559 = vlaneseq
    %v560 = vshrl.u32 %v559, 7
    %v561 = vsub.s32 2, %v560
    %v562 = vrot.slane %v553, %v561
    %v563 = vlaneseq
    %v564 = vshrl.u32 %v563, 7
    %v565 = vsub.s32 2, %v564
    %v566 = vrot.slane %v554, %v565
    %v567 = vmul.f32 %v489, %v558
    %v568 = vmul.f32 %v490, %v562
    %v569 = vmul.f32 %v491, %v566
    %v570 = vmul.f32 %v510, %v552
    %v571 = vmul.f32 %v511, %v553
    %v572 = vmul.f32 %v512, %v554
    %v576 = vrot.slane %v570, 7
    %v577 = vrot.slane %v571, 7
    %v578 = vrot.slane %v572, 7
    %v582 = vsub.f32 %v111, %v576
    %v583 = vsub.f32 %v112, %v577
    %v584 = vsub.f32 %v113, %v578
    %v585 = vlaneseq
    %v586 = vshrl.u32 %v585, 7
    %v587 = vsub.s32 3, %v586
    %v588 = vrot.slane %v582, %v587
    %v589 = vlaneseq
    %v590 = vshrl.u32 %v589, 7
    %v591 = vsub.s32 3, %v590
    %v592 = vrot.slane %v583, %v591
    %v593 = vlaneseq
    %v594 = vshrl.u32 %v593, 7
    %v595 = vsub.s32 3, %v594
    %v596 = vrot.slane %v584, %v595
    %v597 = vadd.f32 %v567, %v588
    %v598 = vadd.f32 %v568, %v592
    %v599 = vadd.f32 %v569, %v596
    %v600 = vmax.f32 %v597, 0.0
    %v601 = vmax.f32 %v598, 0.0
    %v602 = vmax.f32 %v599, 0.0
    %v603 = vld [vmem:[#allocation8] sm:$0xff]
    %v604 = vld [vmem:[#allocation8 + $0x8] sm:$0xff]
    %v605 = vld [vmem:[#allocation8 + $0x10] sm:$0xff]
    %v606 = vld [vmem:[#allocation8 + $0x18] sm:$0xff]
    %v607 = vld [vmem:[#allocation8 + $0x20] sm:$0xff]
    %v608 = vld [vmem:[#allocation8 + $0x28] sm:$0xff]
    %v609 = vld [vmem:[#allocation8 + $0x30] sm:$0xff]
    %v610 = vld [vmem:[#allocation8 + $0x38] sm:$0xff]
    %v611 = vld [vmem:[#allocation8 + $0x40] sm:$0xff]
    %v612 = vld [vmem:[#allocation8 + $0x48] sm:$0xff]
    %v613 = vld [vmem:[#allocation8 + $0x50] sm:$0xff]
    %v614 = vld [vmem:[#allocation8 + $0x58] sm:$0xff]
    %v615 = vld [vmem:[#allocation8 + $0x60] sm:$0xff]
    %v616 = vld [vmem:[#allocation8 + $0x68] sm:$0xff]
    %v617 = vld [vmem:[#allocation8 + $0x70] sm:$0xff]
    %v618 = vld [vmem:[#allocation8 + $0x78] sm:$0xff]
    %v619 = vld [vmem:[#allocation8 + $0x80] sm:$0xff]
    %v620 = vld [vmem:[#allocation8 + $0x88] sm:$0xff]
    %v621 = vld [vmem:[#allocation8 + $0x90] sm:$0xff]
    %v622 = vld [vmem:[#allocation8 + $0x98] sm:$0xff]
    %v623 = vld [vmem:[#allocation8 + $0xa0] sm:$0xff]
    %v624 = vld [vmem:[#allocation8 + $0xa8] sm:$0xff]
    %v625 = vld [vmem:[#allocation8 + $0xb0] sm:$0xff]
    %v626 = vld [vmem:[#allocation8 + $0xb8] sm:$0xff]
    %v627 = vld [vmem:[#allocation8 + $0xc0] sm:$0xff]
    %v628 = vld [vmem:[#allocation8 + $0xc8] sm:$0xff]
    %v629 = vld [vmem:[#allocation8 + $0xd0] sm:$0xff]
    %v630 = vld [vmem:[#allocation8 + $0xd8] sm:$0xff]
    %v631 = vld [vmem:[#allocation8 + $0xe0] sm:$0xff]
    %v632 = vld [vmem:[#allocation8 + $0xe8] sm:$0xff]
    %v633 = vld [vmem:[#allocation8 + $0xf0] sm:$0xff]
    %v634 = vld [vmem:[#allocation8 + $0xf8] sm:$0xff]
    %v635 = vld [vmem:[#allocation8 + $0x100] sm:$0xff]
    %v636 = vld [vmem:[#allocation8 + $0x108] sm:$0xff]
    %v637 = vld [vmem:[#allocation8 + $0x110] sm:$0xff]
    %v638 = vld [vmem:[#allocation8 + $0x118] sm:$0xff]
    %v639 = vld [vmem:[#allocation8 + $0x120] sm:$0xff]
    %v640 = vld [vmem:[#allocation8 + $0x128] sm:$0xff]
    %v641 = vld [vmem:[#allocation8 + $0x130] sm:$0xff]
    %v642 = vld [vmem:[#allocation8 + $0x138] sm:$0xff]
    %v643 = vld [vmem:[#allocation8 + $0x140] sm:$0xff]
    %v644 = vld [vmem:[#allocation8 + $0x148] sm:$0xff]
    %v645 = vld [vmem:[#allocation8 + $0x150] sm:$0xff]
    %v646 = vld [vmem:[#allocation8 + $0x158] sm:$0xff]
    %v647 = vld [vmem:[#allocation8 + $0x160] sm:$0xff]
    %v648 = vld [vmem:[#allocation8 + $0x168] sm:$0xff]
    %v649 = vld [vmem:[#allocation8 + $0x170] sm:$0xff]
    %v650 = vld [vmem:[#allocation8 + $0x178] sm:$0xff]
    %v651 = vld [vmem:[#allocation8 + $0x180] sm:$0xff]
    %v652 = vld [vmem:[#allocation8 + $0x188] sm:$0xff]
    %v653 = vld [vmem:[#allocation8 + $0x190] sm:$0xff]
    %v654 = vld [vmem:[#allocation8 + $0x198] sm:$0xff]
    %v655 = vld [vmem:[#allocation8 + $0x1a0] sm:$0xff]
    %v656 = vld [vmem:[#allocation8 + $0x1a8] sm:$0xff]
    %v657 = vld [vmem:[#allocation8 + $0x1b0] sm:$0xff]
    %v658 = vld [vmem:[#allocation8 + $0x1b8] sm:$0xff]
    %v659 = vld [vmem:[#allocation8 + $0x1c0] sm:$0xff]
    %v660 = vld [vmem:[#allocation8 + $0x1c8] sm:$0xff]
    %v661 = vld [vmem:[#allocation8 + $0x1d0] sm:$0xff]
    %v662 = vld [vmem:[#allocation8 + $0x1d8] sm:$0xff]
    %v663 = vld [vmem:[#allocation8 + $0x1e0] sm:$0xff]
    %v664 = vld [vmem:[#allocation8 + $0x1e8] sm:$0xff]
    %v665 = vld [vmem:[#allocation8 + $0x1f0] sm:$0xff]
    %v666 = vld [vmem:[#allocation8 + $0x1f8] sm:$0xff]
    %v667 = vld [vmem:[#allocation8 + $0x200] sm:$0xff]
    %v668 = vld [vmem:[#allocation8 + $0x208] sm:$0xff]
    %v669 = vld [vmem:[#allocation8 + $0x210] sm:$0xff]
    %v670 = vld [vmem:[#allocation8 + $0x218] sm:$0xff]
    %v671 = vld [vmem:[#allocation8 + $0x220] sm:$0xff]
    %v672 = vld [vmem:[#allocation8 + $0x228] sm:$0xff]
    %v673 = vld [vmem:[#allocation8 + $0x230] sm:$0xff]
    %v674 = vld [vmem:[#allocation8 + $0x238] sm:$0xff]
    %v675 = vld [vmem:[#allocation8 + $0x240] sm:$0xff]
    %v676 = vld [vmem:[#allocation8 + $0x248] sm:$0xff]
    %v677 = vld [vmem:[#allocation8 + $0x250] sm:$0xff]
    %v678 = vld [vmem:[#allocation8 + $0x258] sm:$0xff]
    %v679 = vld [vmem:[#allocation8 + $0x260] sm:$0xff]
    %v680 = vld [vmem:[#allocation8 + $0x268] sm:$0xff]
    %v681 = vld [vmem:[#allocation8 + $0x270] sm:$0xff]
    %v682 = vld [vmem:[#allocation8 + $0x278] sm:$0xff]
    %v683 = vld [vmem:[#allocation8 + $0x280] sm:$0xff]
    %v684 = vld [vmem:[#allocation8 + $0x288] sm:$0xff]
    %v685 = vld [vmem:[#allocation8 + $0x290] sm:$0xff]
    %v686 = vld [vmem:[#allocation8 + $0x298] sm:$0xff]
    %v687 = vld [vmem:[#allocation8 + $0x2a0] sm:$0xff]
    %v688 = vld [vmem:[#allocation8 + $0x2a8] sm:$0xff]
    %v689 = vld [vmem:[#allocation8 + $0x2b0] sm:$0xff]
    %v690 = vld [vmem:[#allocation8 + $0x2b8] sm:$0xff]
    %v691 = vld [vmem:[#allocation8 + $0x2c0] sm:$0xff]
    %v692 = vld [vmem:[#allocation8 + $0x2c8] sm:$0xff]
    %v693 = vld [vmem:[#allocation8 + $0x2d0] sm:$0xff]
    %v694 = vld [vmem:[#allocation8 + $0x2d8] sm:$0xff]
    %v695 = vld [vmem:[#allocation8 + $0x2e0] sm:$0xff]
    %v696 = vld [vmem:[#allocation8 + $0x2e8] sm:$0xff]
    %v697 = vld [vmem:[#allocation8 + $0x2f0] sm:$0xff]
    %v698 = vld [vmem:[#allocation8 + $0x2f8] sm:$0xff]
    %v699 = vld [vmem:[#allocation8 + $0x300] sm:$0xff]
    %v700 = vld [vmem:[#allocation8 + $0x308] sm:$0xff]
    %v701 = vld [vmem:[#allocation8 + $0x310] sm:$0xff]
    %v702 = vld [vmem:[#allocation8 + $0x318] sm:$0xff]
    %v703 = vld [vmem:[#allocation8 + $0x320] sm:$0xff]
    %v704 = vld [vmem:[#allocation8 + $0x328] sm:$0xff]
    %v705 = vld [vmem:[#allocation8 + $0x330] sm:$0xff]
    %v706 = vld [vmem:[#allocation8 + $0x338] sm:$0xff]
    %v707 = vld [vmem:[#allocation8 + $0x340] sm:$0xff]
    %v708 = vld [vmem:[#allocation8 + $0x348] sm:$0xff]
    %v709 = vld [vmem:[#allocation8 + $0x350] sm:$0xff]
    %v710 = vld [vmem:[#allocation8 + $0x358] sm:$0xff]
    %v711 = vld [vmem:[#allocation8 + $0x360] sm:$0xff]
    %v712 = vld [vmem:[#allocation8 + $0x368] sm:$0xff]
    %v713 = vld [vmem:[#allocation8 + $0x370] sm:$0xff]
    %v714 = vld [vmem:[#allocation8 + $0x378] sm:$0xff]
    %v715 = vld [vmem:[#allocation8 + $0x380] sm:$0xff]
    %v716 = vld [vmem:[#allocation8 + $0x388] sm:$0xff]
    %v717 = vld [vmem:[#allocation8 + $0x390] sm:$0xff]
    %v718 = vld [vmem:[#allocation8 + $0x398] sm:$0xff]
    %v719 = vld [vmem:[#allocation8 + $0x3a0] sm:$0xff]
    %v720 = vld [vmem:[#allocation8 + $0x3a8] sm:$0xff]
    %v721 = vld [vmem:[#allocation8 + $0x3b0] sm:$0xff]
    %v722 = vld [vmem:[#allocation8 + $0x3b8] sm:$0xff]
    %v723 = vld [vmem:[#allocation8 + $0x3c0] sm:$0xff]
    %v724 = vld [vmem:[#allocation8 + $0x3c8] sm:$0xff]
    %v725 = vld [vmem:[#allocation8 + $0x3d0] sm:$0xff]
    %v726 = vld [vmem:[#allocation8 + $0x3d8] sm:$0xff]
    %v727 = vld [vmem:[#allocation8 + $0x3e0] sm:$0xff]
    %v728 = vld [vmem:[#allocation8 + $0x3e8] sm:$0xff]
    %v729 = vld [vmem:[#allocation8 + $0x3f0] sm:$0xff]
    %v730 = vld [vmem:[#allocation8 + $0x3f8] sm:$0xff]
    %v731 = vld [vmem:[#allocation8 + $0x400] sm:$0xff]
    %v732 = vld [vmem:[#allocation8 + $0x408] sm:$0xff]
    %v733 = vld [vmem:[#allocation8 + $0x410] sm:$0xff]
    %v734 = vld [vmem:[#allocation8 + $0x418] sm:$0xff]
    %v735 = vld [vmem:[#allocation8 + $0x420] sm:$0xff]
    %v736 = vld [vmem:[#allocation8 + $0x428] sm:$0xff]
    %v737 = vld [vmem:[#allocation8 + $0x430] sm:$0xff]
    %v738 = vld [vmem:[#allocation8 + $0x438] sm:$0xff]
    %v739 = vld [vmem:[#allocation8 + $0x440] sm:$0xff]
    %v740 = vld [vmem:[#allocation8 + $0x448] sm:$0xff]
    %v741 = vld [vmem:[#allocation8 + $0x450] sm:$0xff]
    %v742 = vld [vmem:[#allocation8 + $0x458] sm:$0xff]
    %v743 = vld [vmem:[#allocation8 + $0x460] sm:$0xff]
    %v744 = vld [vmem:[#allocation8 + $0x468] sm:$0xff]
    %v745 = vld [vmem:[#allocation8 + $0x470] sm:$0xff]
    %v746 = vld [vmem:[#allocation8 + $0x478] sm:$0xff]
    %v747 = vlaneseq
    %v748 = vshrl.u32 %v747, 7
    %v749 = vsub.s32 4, %v748
    %v750 = vrot.slane %v111, %v749
    %v751 = vlaneseq
    %v752 = vshrl.u32 %v751, 7
    %v753 = vsub.s32 4, %v752
    %v754 = vrot.slane %v112, %v753
    %v755 = vlaneseq
    %v756 = vshrl.u32 %v755, 7
    %v757 = vsub.s32 4, %v756
    %v758 = vrot.slane %v113, %v757
    %759 = vmatprep.subr.mxu0 %v604
    %760 = vmatpush1.msra.mxu0 %v603
    %761 = vmatprep.subr.mxu0 %v607
    %762 = vmatpush1.msra.mxu0 %v606
    %763 = vmatprep.subr.mxu0 %v610
    %764 = vmatpush1.msra.mxu0 %v609
    %765 = vmatprep.subr.mxu0 %v613
    %766 = vmatpush1.msra.mxu0 %v612
    %767 = vmatprep.subr.mxu0 %v616
    %768 = vmatpush1.msra.mxu0 %v615
    %769 = vmatprep.subr.mxu0 %v619
    %770 = vmatpush1.msra.mxu0 %v618
    %771 = vmatprep.subr.mxu0 %v622
    %772 = vmatpush1.msra.mxu0 %v621
    %773 = vmatprep.subr.mxu0 %v625
    %774 = vmatpush1.msra.mxu0 %v624
    %775 = vmatprep.subr.mxu0 %v628
    %776 = vmatpush1.msra.mxu0 %v627
    %777 = vmatprep.subr.mxu0 %v631
    %778 = vmatpush1.msra.mxu0 %v630
    %779 = vmatprep.subr.mxu0 %v634
    %780 = vmatpush1.msra.mxu0 %v633
    %781 = vmatprep.subr.mxu0 %v637
    %782 = vmatpush1.msra.mxu0 %v636
    %783 = vmatprep.subr.mxu0 %v640
    %784 = vmatpush1.msra.mxu0 %v639
    %785 = vmatprep.subr.mxu0 %v643
    %786 = vmatpush1.msra.mxu0 %v642
    %787 = vmatprep.subr.mxu0 %v646
    %788 = vmatpush1.msra.mxu0 %v645
    %789 = vmatprep.subr.mxu0 %v649
    %790 = vmatpush1.msra.mxu0 %v648
    %791 = vmatprep.subr.mxu0 %v652
    %792 = vmatpush1.msra.mxu0 %v651
    %793 = vmatprep.subr.mxu0 %v655
    %794 = vmatpush1.msra.mxu0 %v654
    %795 = vmatprep.subr.mxu0 %v658
    %796 = vmatpush1.msra.mxu0 %v657
    %797 = vmatprep.subr.mxu0 %v661
    %798 = vmatpush1.msra.mxu0 %v660
    %799 = vmatprep.subr.mxu0 %v664
    %800 = vmatpush1.msra.mxu0 %v663
    %801 = vmatprep.subr.mxu0 %v667
    %802 = vmatpush1.msra.mxu0 %v666
    %803 = vmatprep.subr.mxu0 %v670
    %804 = vmatpush1.msra.mxu0 %v669
    %805 = vmatprep.subr.mxu0 %v673
    %806 = vmatpush1.msra.mxu0 %v672
    %807 = vmatprep.subr.mxu0 %v676
    %808 = vmatpush1.msra.mxu0 %v675
    %809 = vmatprep.subr.mxu0 %v679
    %810 = vmatpush1.msra.mxu0 %v678
    %811 = vmatprep.subr.mxu0 %v682
    %812 = vmatpush1.msra.mxu0 %v681
    %813 = vmatprep.subr.mxu0 %v685
    %814 = vmatpush1.msra.mxu0 %v684
    %815 = vmatprep.subr.mxu0 %v688
    %816 = vmatpush1.msra.mxu0 %v687
    %817 = vmatprep.subr.mxu0 %v691
    %818 = vmatpush1.msra.mxu0 %v690
    %819 = vmatprep.subr.mxu0 %v694
    %820 = vmatpush1.msra.mxu0 %v693
    %821 = vmatprep.subr.mxu0 %v697
    %822 = vmatpush1.msra.mxu0 %v696
    %823 = vmatprep.mubr.f32.mxu0 %v601
    %824 = vmatmul.mubr.f32.gmra.mrb[0].mxu0 %v600
    %v825 = vpop.f32.mrb[0].mxu0
    %v826 = vadd.f32 %v750, %v825
    %v827 = vpop.f32.mrb[0].mxu0
    %v828 = vadd.f32 %v754, %v827
    %829 = vdwg.mxu0
    %830 = vmatprep.subr.mxu0 %v700
    %831 = vmatpush1.msra.mxu0 %v699
    %832 = vmatprep.subr.mxu0 %v703
    %833 = vmatpush1.msra.mxu0 %v702
    %834 = vmatprep.subr.mxu0 %v706
    %835 = vmatpush1.msra.mxu0 %v705
    %836 = vmatprep.subr.mxu0 %v709
    %837 = vmatpush1.msra.mxu0 %v708
    %838 = vmatprep.subr.mxu0 %v712
    %839 = vmatpush1.msra.mxu0 %v711
    %840 = vmatprep.subr.mxu0 %v715
    %841 = vmatpush1.msra.mxu0 %v714
    %842 = vmatprep.subr.mxu0 %v718
    %843 = vmatpush1.msra.mxu0 %v717
    %844 = vmatprep.subr.mxu0 %v721
    %845 = vmatpush1.msra.mxu0 %v720
    %846 = vmatprep.subr.mxu0 %v724
    %847 = vmatpush1.msra.mxu0 %v723
    %848 = vmatprep.subr.mxu0 %v727
    %849 = vmatpush1.msra.mxu0 %v726
    %850 = vmatprep.subr.mxu0 %v730
    %851 = vmatpush1.msra.mxu0 %v729
    %852 = vmatprep.subr.mxu0 %v733
    %853 = vmatpush1.msra.mxu0 %v732
    %854 = vmatprep.subr.mxu0 %v736
    %855 = vmatpush1.msra.mxu0 %v735
    %856 = vmatprep.subr.mxu0 %v739
    %857 = vmatpush1.msra.mxu0 %v738
    %858 = vmatprep.subr.mxu0 %v742
    %859 = vmatpush1.msra.mxu0 %v741
    %860 = vmatprep.subr.mxu0 %v745
    %861 = vmatpush1.msra.mxu0 %v744
    %862 = vmatprep.subr.mxu0 0.0
    %863 = vmatpush1.msra.mxu0 0.0
    %864 = vmatprep.subr.mxu0 0.0
    %865 = vmatpush1.msra.mxu0 0.0
    %866 = vmatprep.subr.mxu0 0.0
    %867 = vmatpush1.msra.mxu0 0.0
    %868 = vmatprep.subr.mxu0 0.0
    %869 = vmatpush1.msra.mxu0 0.0
    %870 = vmatprep.subr.mxu0 0.0
    %871 = vmatpush1.msra.mxu0 0.0
    %872 = vmatprep.subr.mxu0 0.0
    %873 = vmatpush1.msra.mxu0 0.0
    %874 = vmatprep.subr.mxu0 0.0
    %875 = vmatpush1.msra.mxu0 0.0
    %876 = vmatprep.subr.mxu0 0.0
    %877 = vmatpush1.msra.mxu0 0.0
    %878 = vmatprep.subr.mxu0 0.0
    %879 = vmatpush1.msra.mxu0 0.0
    %880 = vmatprep.subr.mxu0 0.0
    %881 = vmatpush1.msra.mxu0 0.0
    %882 = vmatprep.subr.mxu0 0.0
    %883 = vmatpush1.msra.mxu0 0.0
    %884 = vmatprep.subr.mxu0 0.0
    %885 = vmatpush1.msra.mxu0 0.0
    %886 = vmatprep.subr.mxu0 0.0
    %887 = vmatpush1.msra.mxu0 0.0
    %888 = vmatprep.subr.mxu0 0.0
    %889 = vmatpush1.msra.mxu0 0.0
    %890 = vmatprep.subr.mxu0 0.0
    %891 = vmatpush1.msra.mxu0 0.0
    %892 = vmatprep.subr.mxu0 0.0
    %893 = vmatpush1.msra.mxu0 0.0
    %894 = vmatprep.mubr.f32.mxu0 0.0
    %895 = vmatmul.mubr.f32.gmra.mrb[0].mxu0 %v602
    %v896 = vpop.f32.mrb[0].mxu0
    %v897 = vadd.f32 %v826, %v896
    %v898 = vpop.f32.mrb[0].mxu0
    %v899 = vadd.f32 %v828, %v898
    %900 = vdwg.mxu0
    %901 = vmatprep.subr.mxu0 0.0
    %902 = vmatpush1.msra.mxu0 %v605
    %903 = vmatprep.subr.mxu0 0.0
    %904 = vmatpush1.msra.mxu0 %v608
    %905 = vmatprep.subr.mxu0 0.0
    %906 = vmatpush1.msra.mxu0 %v611
    %907 = vmatprep.subr.mxu0 0.0
    %908 = vmatpush1.msra.mxu0 %v614
    %909 = vmatprep.subr.mxu0 0.0
    %910 = vmatpush1.msra.mxu0 %v617
    %911 = vmatprep.subr.mxu0 0.0
    %912 = vmatpush1.msra.mxu0 %v620
    %913 = vmatprep.subr.mxu0 0.0
    %914 = vmatpush1.msra.mxu0 %v623
    %915 = vmatprep.subr.mxu0 0.0
    %916 = vmatpush1.msra.mxu0 %v626
    %917 = vmatprep.subr.mxu0 0.0
    %918 = vmatpush1.msra.mxu0 %v629
    %919 = vmatprep.subr.mxu0 0.0
    %920 = vmatpush1.msra.mxu0 %v632
    %921 = vmatprep.subr.mxu0 0.0
    %922 = vmatpush1.msra.mxu0 %v635
    %923 = vmatprep.subr.mxu0 0.0
    %924 = vmatpush1.msra.mxu0 %v638
    %925 = vmatprep.subr.mxu0 0.0
    %926 = vmatpush1.msra.mxu0 %v641
    %927 = vmatprep.subr.mxu0 0.0
    %928 = vmatpush1.msra.mxu0 %v644
    %929 = vmatprep.subr.mxu0 0.0
    %930 = vmatpush1.msra.mxu0 %v647
    %931 = vmatprep.subr.mxu0 0.0
    %932 = vmatpush1.msra.mxu0 %v650
    %933 = vmatprep.subr.mxu0 0.0
    %934 = vmatpush1.msra.mxu0 %v653
    %935 = vmatprep.subr.mxu0 0.0
    %936 = vmatpush1.msra.mxu0 %v656
    %937 = vmatprep.subr.mxu0 0.0
    %938 = vmatpush1.msra.mxu0 %v659
    %939 = vmatprep.subr.mxu0 0.0
    %940 = vmatpush1.msra.mxu0 %v662
    %941 = vmatprep.subr.mxu0 0.0
    %942 = vmatpush1.msra.mxu0 %v665
    %943 = vmatprep.subr.mxu0 0.0
    %944 = vmatpush1.msra.mxu0 %v668
    %945 = vmatprep.subr.mxu0 0.0
    %946 = vmatpush1.msra.mxu0 %v671
    %947 = vmatprep.subr.mxu0 0.0
    %948 = vmatpush1.msra.mxu0 %v674
    %949 = vmatprep.subr.mxu0 0.0
    %950 = vmatpush1.msra.mxu0 %v677
    %951 = vmatprep.subr.mxu0 0.0
    %952 = vmatpush1.msra.mxu0 %v680
    %953 = vmatprep.subr.mxu0 0.0
    %954 = vmatpush1.msra.mxu0 %v683
    %955 = vmatprep.subr.mxu0 0.0
    %956 = vmatpush1.msra.mxu0 %v686
    %957 = vmatprep.subr.mxu0 0.0
    %958 = vmatpush1.msra.mxu0 %v689
    %959 = vmatprep.subr.mxu0 0.0
    %960 = vmatpush1.msra.mxu0 %v692
    %961 = vmatprep.subr.mxu0 0.0
    %962 = vmatpush1.msra.mxu0 %v695
    %963 = vmatprep.subr.mxu0 0.0
    %964 = vmatpush1.msra.mxu0 %v698
    %965 = vmatprep.mubr.f32.mxu0 %v601
    %966 = vmatmul.mubr.f32.gmra.mrb[0].mxu0 %v600
    %v967 = vpop.f32.mrb[0].mxu0
    %v968 = vadd.f32 %v758, %v967
    %v969 = vpop.f32.mrb[0].mxu0
    %970 = vdwg.mxu0
    %971 = vmatprep.subr.mxu0 0.0
    %972 = vmatpush1.msra.mxu0 %v701
    %973 = vmatprep.subr.mxu0 0.0
    %974 = vmatpush1.msra.mxu0 %v704
    %975 = vmatprep.subr.mxu0 0.0
    %976 = vmatpush1.msra.mxu0 %v707
    %977 = vmatprep.subr.mxu0 0.0
    %978 = vmatpush1.msra.mxu0 %v710
    %979 = vmatprep.subr.mxu0 0.0
    %980 = vmatpush1.msra.mxu0 %v713
    %981 = vmatprep.subr.mxu0 0.0
    %982 = vmatpush1.msra.mxu0 %v716
    %983 = vmatprep.subr.mxu0 0.0
    %984 = vmatpush1.msra.mxu0 %v719
    %985 = vmatprep.subr.mxu0 0.0
    %986 = vmatpush1.msra.mxu0 %v722
    %987 = vmatprep.subr.mxu0 0.0
    %988 = vmatpush1.msra.mxu0 %v725
    %989 = vmatprep.subr.mxu0 0.0
    %990 = vmatpush1.msra.mxu0 %v728
    %991 = vmatprep.subr.mxu0 0.0
    %992 = vmatpush1.msra.mxu0 %v731
    %993 = vmatprep.subr.mxu0 0.0
    %994 = vmatpush1.msra.mxu0 %v734
    %995 = vmatprep.subr.mxu0 0.0
    %996 = vmatpush1.msra.mxu0 %v737
    %997 = vmatprep.subr.mxu0 0.0
    %998 = vmatpush1.msra.mxu0 %v740
    %999 = vmatprep.subr.mxu0 0.0
    %1000 = vmatpush1.msra.mxu0 %v743
    %1001 = vmatprep.subr.mxu0 0.0
    %1002 = vmatpush1.msra.mxu0 %v746
    %1003 = vmatprep.subr.mxu0 0.0
    %1004 = vmatpush1.msra.mxu0 0.0
    %1005 = vmatprep.subr.mxu0 0.0
    %1006 = vmatpush1.msra.mxu0 0.0
    %1007 = vmatprep.subr.mxu0 0.0
    %1008 = vmatpush1.msra.mxu0 0.0
    %1009 = vmatprep.subr.mxu0 0.0
    %1010 = vmatpush1.msra.mxu0 0.0
    %1011 = vmatprep.subr.mxu0 0.0
    %1012 = vmatpush1.msra.mxu0 0.0
    %1013 = vmatprep.subr.mxu0 0.0
    %1014 = vmatpush1.msra.mxu0 0.0
    %1015 = vmatprep.subr.mxu0 0.0
    %1016 = vmatpush1.msra.mxu0 0.0
    %1017 = vmatprep.subr.mxu0 0.0
    %1018 = vmatpush1.msra.mxu0 0.0
    %1019 = vmatprep.subr.mxu0 0.0
    %1020 = vmatpush1.msra.mxu0 0.0
    %1021 = vmatprep.subr.mxu0 0.0
    %1022 = vmatpush1.msra.mxu0 0.0
    %1023 = vmatprep.subr.mxu0 0.0
    %1024 = vmatpush1.msra.mxu0 0.0
    %1025 = vmatprep.subr.mxu0 0.0
    %1026 = vmatpush1.msra.mxu0 0.0
    %1027 = vmatprep.subr.mxu0 0.0
    %1028 = vmatpush1.msra.mxu0 0.0
    %1029 = vmatprep.subr.mxu0 0.0
    %1030 = vmatpush1.msra.mxu0 0.0
    %1031 = vmatprep.subr.mxu0 0.0
    %1032 = vmatpush1.msra.mxu0 0.0
    %1033 = vmatprep.subr.mxu0 0.0
    %1034 = vmatpush1.msra.mxu0 0.0
    %1035 = vmatprep.mubr.f32.mxu0 0.0
    %1036 = vmatmul.mubr.f32.gmra.mrb[0].mxu0 %v602
    %v1037 = vpop.f32.mrb[0].mxu0
    %v1038 = vadd.f32 %v968, %v1037
    %v1039 = vpop.f32.mrb[0].mxu0
    %1040 = vdwg.mxu0
    %v1041 = vrot.slane %v897, 4
    %v1042 = vadd.f32 %v897, %v1041
    %v1043 = vrot.slane %v1042, 2
    %v1044 = vadd.f32 %v1042, %v1043
    %v1045 = vrot.slane %v1044, 1
    %v1046 = vadd.f32 %v1044, %v1045
    %v1047 = vrot.slane %v899, 4
    %v1048 = vadd.f32 %v899, %v1047
    %v1049 = vrot.slane %v1048, 2
    %v1050 = vadd.f32 %v1048, %v1049
    %v1051 = vrot.slane %v1050, 1
    %v1052 = vadd.f32 %v1050, %v1051
    %v1053 = vrot.slane %v1038, 4
    %v1054 = vadd.f32 %v1038, %v1053
    %v1055 = vrot.slane %v1054, 2
    %v1056 = vadd.f32 %v1054, %v1055
    %v1057 = vrot.slane %v1056, 1
    %v1058 = vadd.f32 %v1056, %v1057
    %v1059 = vmul.f32 %v1046, %v126
    %v1060 = vmul.f32 %v1052, %v126
    %v1061 = vmul.f32 %v1058, %v126
    %v1062 = vmul.f32 %v897, %v897
    %v1063 = vmul.f32 %v899, %v899
    %v1064 = vmul.f32 %v1038, %v1038
    %v1065 = vrot.slane %v1062, 4
    %v1066 = vadd.f32 %v1062, %v1065
    %v1067 = vrot.slane %v1066, 2
    %v1068 = vadd.f32 %v1066, %v1067
    %v1069 = vrot.slane %v1068, 1
    %v1070 = vadd.f32 %v1068, %v1069
    %v1071 = vrot.slane %v1063, 4
    %v1072 = vadd.f32 %v1063, %v1071
    %v1073 = vrot.slane %v1072, 2
    %v1074 = vadd.f32 %v1072, %v1073
    %v1075 = vrot.slane %v1074, 1
    %v1076 = vadd.f32 %v1074, %v1075
    %v1077 = vrot.slane %v1064, 4
    %v1078 = vadd.f32 %v1064, %v1077
    %v1079 = vrot.slane %v1078, 2
    %v1080 = vadd.f32 %v1078, %v1079
    %v1081 = vrot.slane %v1080, 1
    %v1082 = vadd.f32 %v1080, %v1081
    %v1083 = vmul.f32 %v1070, %v126
    %v1084 = vmul.f32 %v1076, %v126
    %v1085 = vmul.f32 %v1082, %v126
    %v1086 = vmul.f32 %v1059, %v1059
    %v1087 = vmul.f32 %v1060, %v1060
    %v1088 = vmul.f32 %v1061, %v1061
    %v1089 = vsub.f32 %v1083, %v1086
    %v1090 = vsub.f32 %v1084, %v1087
    %v1091 = vsub.f32 %v1085, %v1088
    %v1092 = vmax.f32 %v1089, 0.0
    %v1093 = vmax.f32 %v1090, 0.0
    %v1094 = vmax.f32 %v1091, 0.0
    %v1095 = vadd.f32 %v1092, 1e-05
    %v1096 = vadd.f32 %v1093, 1e-05
    %v1097 = vadd.f32 %v1094, 1e-05
    %v1098 = vrsqrt.pop %v1095
    %v1099 = vrsqrt.pop %v1096
    %v1100 = vrsqrt.pop %v1097
    %v1101 = vmul.f32 %v1098, %v111
    %v1102 = vmul.f32 %v1099, %v112
    %v1103 = vmul.f32 %v1100, %v113
    %v1104 = vlaneseq
    %v1105 = vshrl.u32 %v1104, 7
    %v1106 = vsub.s32 5, %v1105
    %v1107 = vrot.slane %v1101, %v1106
    %v1108 = vlaneseq
    %v1109 = vshrl.u32 %v1108, 7
    %v1110 = vsub.s32 5, %v1109
    %v1111 = vrot.slane %v1102, %v1110
    %v1112 = vlaneseq
    %v1113 = vshrl.u32 %v1112, 7
    %v1114 = vsub.s32 5, %v1113
    %v1115 = vrot.slane %v1103, %v1114
    %v1116 = vmul.f32 %v897, %v1107
    %v1117 = vmul.f32 %v899, %v1111
    %v1118 = vmul.f32 %v1038, %v1115
    %v1119 = vmul.f32 %v1059, %v1101
    %v1120 = vmul.f32 %v1060, %v1102
    %v1121 = vmul.f32 %v1061, %v1103
    %v1125 = vrot.slane %v1119, 7
    %v1126 = vrot.slane %v1120, 7
    %v1127 = vrot.slane %v1121, 7
    %v1131 = vsub.f32 %v111, %v1125
    %v1132 = vsub.f32 %v112, %v1126
    %v1133 = vsub.f32 %v113, %v1127
    %v1134 = vlaneseq
    %v1135 = vshrl.u32 %v1134, 7
    %v1136 = vsub.s32 6, %v1135
    %v1137 = vrot.slane %v1131, %v1136
    %v1138 = vlaneseq
    %v1139 = vshrl.u32 %v1138, 7
    %v1140 = vsub.s32 6, %v1139
    %v1141 = vrot.slane %v1132, %v1140
    %v1142 = vlaneseq
    %v1143 = vshrl.u32 %v1142, 7
    %v1144 = vsub.s32 6, %v1143
    %v1145 = vrot.slane %v1133, %v1144
    %v1146 = vadd.f32 %v1116, %v1137
    %v1147 = vadd.f32 %v1117, %v1141
    %v1148 = vadd.f32 %v1118, %v1145
    %v1149 = vmax.f32 %v1146, 0.0
    %v1150 = vmax.f32 %v1147, 0.0
    %v1151 = vmax.f32 %v1148, 0.0
    %v1152 = vld [vmem:[#allocation10] sm:$0xff]
    %v1153 = vld [vmem:[#allocation10 + $0x8] sm:$0xff]
    %v1154 = vld [vmem:[#allocation10 + $0x10] sm:$0xff]
    %v1155 = vld [vmem:[#allocation10 + $0x18] sm:$0xff]
    %v1156 = vld [vmem:[#allocation10 + $0x20] sm:$0xff]
    %v1157 = vld [vmem:[#allocation10 + $0x28] sm:$0xff]
    %v1158 = vld [vmem:[#allocation10 + $0x30] sm:$0xff]
    %v1159 = vld [vmem:[#allocation10 + $0x38] sm:$0xff]
    %v1160 = vld [vmem:[#allocation10 + $0x40] sm:$0xff]
    %v1161 = vld [vmem:[#allocation10 + $0x48] sm:$0xff]
    %v1162 = vld [vmem:[#allocation10 + $0x50] sm:$0xff]
    %v1163 = vld [vmem:[#allocation10 + $0x58] sm:$0xff]
    %v1164 = vld [vmem:[#allocation10 + $0x60] sm:$0xff]
    %v1165 = vld [vmem:[#allocation10 + $0x68] sm:$0xff]
    %v1166 = vld [vmem:[#allocation10 + $0x70] sm:$0xff]
    %v1167 = vld [vmem:[#allocation10 + $0x78] sm:$0xff]
    %v1168 = vld [vmem:[#allocation10 + $0x80] sm:$0xff]
    %v1169 = vld [vmem:[#allocation10 + $0x88] sm:$0xff]
    %v1170 = vld [vmem:[#allocation10 + $0x90] sm:$0xff]
    %v1171 = vld [vmem:[#allocation10 + $0x98] sm:$0xff]
    %v1172 = vld [vmem:[#allocation10 + $0xa0] sm:$0xff]
    %v1173 = vld [vmem:[#allocation10 + $0xa8] sm:$0xff]
    %v1174 = vld [vmem:[#allocation10 + $0xb0] sm:$0xff]
    %v1175 = vld [vmem:[#allocation10 + $0xb8] sm:$0xff]
    %v1176 = vld [vmem:[#allocation10 + $0xc0] sm:$0xff]
    %v1177 = vld [vmem:[#allocation10 + $0xc8] sm:$0xff]
    %v1178 = vld [vmem:[#allocation10 + $0xd0] sm:$0xff]
    %v1179 = vld [vmem:[#allocation10 + $0xd8] sm:$0xff]
    %v1180 = vld [vmem:[#allocation10 + $0xe0] sm:$0xff]
    %v1181 = vld [vmem:[#allocation10 + $0xe8] sm:$0xff]
    %v1182 = vld [vmem:[#allocation10 + $0xf0] sm:$0xff]
    %v1183 = vld [vmem:[#allocation10 + $0xf8] sm:$0xff]
    %v1184 = vld [vmem:[#allocation10 + $0x100] sm:$0xff]
    %v1185 = vld [vmem:[#allocation10 + $0x108] sm:$0xff]
    %v1186 = vld [vmem:[#allocation10 + $0x110] sm:$0xff]
    %v1187 = vld [vmem:[#allocation10 + $0x118] sm:$0xff]
    %v1188 = vld [vmem:[#allocation10 + $0x120] sm:$0xff]
    %v1189 = vld [vmem:[#allocation10 + $0x128] sm:$0xff]
    %v1190 = vld [vmem:[#allocation10 + $0x130] sm:$0xff]
    %v1191 = vld [vmem:[#allocation10 + $0x138] sm:$0xff]
    %v1192 = vld [vmem:[#allocation10 + $0x140] sm:$0xff]
    %v1193 = vld [vmem:[#allocation10 + $0x148] sm:$0xff]
    %v1194 = vld [vmem:[#allocation10 + $0x150] sm:$0xff]
    %v1195 = vld [vmem:[#allocation10 + $0x158] sm:$0xff]
    %v1196 = vld [vmem:[#allocation10 + $0x160] sm:$0xff]
    %v1197 = vld [vmem:[#allocation10 + $0x168] sm:$0xff]
    %v1198 = vld [vmem:[#allocation10 + $0x170] sm:$0xff]
    %v1199 = vld [vmem:[#allocation10 + $0x178] sm:$0xff]
    %v1200 = vld [vmem:[#allocation10 + $0x180] sm:$0xff]
    %v1201 = vld [vmem:[#allocation10 + $0x188] sm:$0xff]
    %v1202 = vld [vmem:[#allocation10 + $0x190] sm:$0xff]
    %v1203 = vld [vmem:[#allocation10 + $0x198] sm:$0xff]
    %v1204 = vld [vmem:[#allocation10 + $0x1a0] sm:$0xff]
    %v1205 = vld [vmem:[#allocation10 + $0x1a8] sm:$0xff]
    %v1206 = vld [vmem:[#allocation10 + $0x1b0] sm:$0xff]
    %v1207 = vld [vmem:[#allocation10 + $0x1b8] sm:$0xff]
    %v1208 = vld [vmem:[#allocation10 + $0x1c0] sm:$0xff]
    %v1209 = vld [vmem:[#allocation10 + $0x1c8] sm:$0xff]
    %v1210 = vld [vmem:[#allocation10 + $0x1d0] sm:$0xff]
    %v1211 = vld [vmem:[#allocation10 + $0x1d8] sm:$0xff]
    %v1212 = vld [vmem:[#allocation10 + $0x1e0] sm:$0xff]
    %v1213 = vld [vmem:[#allocation10 + $0x1e8] sm:$0xff]
    %v1214 = vld [vmem:[#allocation10 + $0x1f0] sm:$0xff]
    %v1215 = vld [vmem:[#allocation10 + $0x1f8] sm:$0xff]
    %v1216 = vld [vmem:[#allocation10 + $0x200] sm:$0xff]
    %v1217 = vld [vmem:[#allocation10 + $0x208] sm:$0xff]
    %v1218 = vld [vmem:[#allocation10 + $0x210] sm:$0xff]
    %v1219 = vld [vmem:[#allocation10 + $0x218] sm:$0xff]
    %v1220 = vld [vmem:[#allocation10 + $0x220] sm:$0xff]
    %v1221 = vld [vmem:[#allocation10 + $0x228] sm:$0xff]
    %v1222 = vld [vmem:[#allocation10 + $0x230] sm:$0xff]
    %v1223 = vld [vmem:[#allocation10 + $0x238] sm:$0xff]
    %v1224 = vld [vmem:[#allocation10 + $0x240] sm:$0xff]
    %v1225 = vld [vmem:[#allocation10 + $0x248] sm:$0xff]
    %v1226 = vld [vmem:[#allocation10 + $0x250] sm:$0xff]
    %v1227 = vld [vmem:[#allocation10 + $0x258] sm:$0xff]
    %v1228 = vld [vmem:[#allocation10 + $0x260] sm:$0xff]
    %v1229 = vld [vmem:[#allocation10 + $0x268] sm:$0xff]
    %v1230 = vld [vmem:[#allocation10 + $0x270] sm:$0xff]
    %v1231 = vld [vmem:[#allocation10 + $0x278] sm:$0xff]
    %v1232 = vld [vmem:[#allocation10 + $0x280] sm:$0xff]
    %v1233 = vld [vmem:[#allocation10 + $0x288] sm:$0xff]
    %v1234 = vld [vmem:[#allocation10 + $0x290] sm:$0xff]
    %v1235 = vld [vmem:[#allocation10 + $0x298] sm:$0xff]
    %v1236 = vld [vmem:[#allocation10 + $0x2a0] sm:$0xff]
    %v1237 = vld [vmem:[#allocation10 + $0x2a8] sm:$0xff]
    %v1238 = vld [vmem:[#allocation10 + $0x2b0] sm:$0xff]
    %v1239 = vld [vmem:[#allocation10 + $0x2b8] sm:$0xff]
    %v1240 = vld [vmem:[#allocation10 + $0x2c0] sm:$0xff]
    %v1241 = vld [vmem:[#allocation10 + $0x2c8] sm:$0xff]
    %v1242 = vld [vmem:[#allocation10 + $0x2d0] sm:$0xff]
    %v1243 = vld [vmem:[#allocation10 + $0x2d8] sm:$0xff]
    %v1244 = vld [vmem:[#allocation10 + $0x2e0] sm:$0xff]
    %v1245 = vld [vmem:[#allocation10 + $0x2e8] sm:$0xff]
    %v1246 = vld [vmem:[#allocation10 + $0x2f0] sm:$0xff]
    %v1247 = vld [vmem:[#allocation10 + $0x2f8] sm:$0xff]
    %v1248 = vld [vmem:[#allocation10 + $0x300] sm:$0xff]
    %v1249 = vld [vmem:[#allocation10 + $0x308] sm:$0xff]
    %v1250 = vld [vmem:[#allocation10 + $0x310] sm:$0xff]
    %v1251 = vld [vmem:[#allocation10 + $0x318] sm:$0xff]
    %v1252 = vld [vmem:[#allocation10 + $0x320] sm:$0xff]
    %v1253 = vld [vmem:[#allocation10 + $0x328] sm:$0xff]
    %v1254 = vld [vmem:[#allocation10 + $0x330] sm:$0xff]
    %v1255 = vld [vmem:[#allocation10 + $0x338] sm:$0xff]
    %v1256 = vld [vmem:[#allocation10 + $0x340] sm:$0xff]
    %v1257 = vld [vmem:[#allocation10 + $0x348] sm:$0xff]
    %v1258 = vld [vmem:[#allocation10 + $0x350] sm:$0xff]
    %v1259 = vld [vmem:[#allocation10 + $0x358] sm:$0xff]
    %v1260 = vld [vmem:[#allocation10 + $0x360] sm:$0xff]
    %v1261 = vld [vmem:[#allocation10 + $0x368] sm:$0xff]
    %v1262 = vld [vmem:[#allocation10 + $0x370] sm:$0xff]
    %v1263 = vld [vmem:[#allocation10 + $0x378] sm:$0xff]
    %v1264 = vld [vmem:[#allocation10 + $0x380] sm:$0xff]
    %v1265 = vld [vmem:[#allocation10 + $0x388] sm:$0xff]
    %v1266 = vld [vmem:[#allocation10 + $0x390] sm:$0xff]
    %v1267 = vld [vmem:[#allocation10 + $0x398] sm:$0xff]
    %v1268 = vld [vmem:[#allocation10 + $0x3a0] sm:$0xff]
    %v1269 = vld [vmem:[#allocation10 + $0x3a8] sm:$0xff]
    %v1270 = vld [vmem:[#allocation10 + $0x3b0] sm:$0xff]
    %v1271 = vld [vmem:[#allocation10 + $0x3b8] sm:$0xff]
    %v1272 = vld [vmem:[#allocation10 + $0x3c0] sm:$0xff]
    %v1273 = vld [vmem:[#allocation10 + $0x3c8] sm:$0xff]
    %v1274 = vld [vmem:[#allocation10 + $0x3d0] sm:$0xff]
    %v1275 = vld [vmem:[#allocation10 + $0x3d8] sm:$0xff]
    %v1276 = vld [vmem:[#allocation10 + $0x3e0] sm:$0xff]
    %v1277 = vld [vmem:[#allocation10 + $0x3e8] sm:$0xff]
    %v1278 = vld [vmem:[#allocation10 + $0x3f0] sm:$0xff]
    %v1279 = vld [vmem:[#allocation10 + $0x3f8] sm:$0xff]
    %v1280 = vld [vmem:[#allocation10 + $0x400] sm:$0xff]
    %v1281 = vld [vmem:[#allocation10 + $0x408] sm:$0xff]
    %v1282 = vld [vmem:[#allocation10 + $0x410] sm:$0xff]
    %v1283 = vld [vmem:[#allocation10 + $0x418] sm:$0xff]
    %v1284 = vld [vmem:[#allocation10 + $0x420] sm:$0xff]
    %v1285 = vld [vmem:[#allocation10 + $0x428] sm:$0xff]
    %v1286 = vld [vmem:[#allocation10 + $0x430] sm:$0xff]
    %v1287 = vld [vmem:[#allocation10 + $0x438] sm:$0xff]
    %v1288 = vld [vmem:[#allocation10 + $0x440] sm:$0xff]
    %v1289 = vld [vmem:[#allocation10 + $0x448] sm:$0xff]
    %v1290 = vld [vmem:[#allocation10 + $0x450] sm:$0xff]
    %v1291 = vld [vmem:[#allocation10 + $0x458] sm:$0xff]
    %v1292 = vld [vmem:[#allocation10 + $0x460] sm:$0xff]
    %v1293 = vld [vmem:[#allocation10 + $0x468] sm:$0xff]
    %v1294 = vld [vmem:[#allocation10 + $0x470] sm:$0xff]
    %v1295 = vld [vmem:[#allocation10 + $0x478] sm:$0xff]
    %v1296 = vlaneseq
    %v1297 = vshrl.u32 %v1296, 7
    %v1298 = vsub.s32 7, %v1297
    %v1299 = vrot.slane %v111, %v1298
    %v1300 = vlaneseq
    %v1301 = vshrl.u32 %v1300, 7
    %v1302 = vsub.s32 7, %v1301
    %v1303 = vrot.slane %v112, %v1302
    %v1304 = vlaneseq
    %v1305 = vshrl.u32 %v1304, 7
    %v1306 = vsub.s32 7, %v1305
    %v1307 = vrot.slane %v113, %v1306
    %1308 = vmatprep.subr.mxu0 %v1153
    %1309 = vmatpush1.msra.mxu0 %v1152
    %1310 = vmatprep.subr.mxu0 %v1156
    %1311 = vmatpush1.msra.mxu0 %v1155
    %1312 = vmatprep.subr.mxu0 %v1159
    %1313 = vmatpush1.msra.mxu0 %v1158
    %1314 = vmatprep.subr.mxu0 %v1162
    %1315 = vmatpush1.msra.mxu0 %v1161
    %1316 = vmatprep.subr.mxu0 %v1165
    %1317 = vmatpush1.msra.mxu0 %v1164
    %1318 = vmatprep.subr.mxu0 %v1168
    %1319 = vmatpush1.msra.mxu0 %v1167
    %1320 = vmatprep.subr.mxu0 %v1171
    %1321 = vmatpush1.msra.mxu0 %v1170
    %1322 = vmatprep.subr.mxu0 %v1174
    %1323 = vmatpush1.msra.mxu0 %v1173
    %1324 = vmatprep.subr.mxu0 %v1177
    %1325 = vmatpush1.msra.mxu0 %v1176
    %1326 = vmatprep.subr.mxu0 %v1180
    %1327 = vmatpush1.msra.mxu0 %v1179
    %1328 = vmatprep.subr.mxu0 %v1183
    %1329 = vmatpush1.msra.mxu0 %v1182
    %1330 = vmatprep.subr.mxu0 %v1186
    %1331 = vmatpush1.msra.mxu0 %v1185
    %1332 = vmatprep.subr.mxu0 %v1189
    %1333 = vmatpush1.msra.mxu0 %v1188
    %1334 = vmatprep.subr.mxu0 %v1192
    %1335 = vmatpush1.msra.mxu0 %v1191
    %1336 = vmatprep.subr.mxu0 %v1195
    %1337 = vmatpush1.msra.mxu0 %v1194
    %1338 = vmatprep.subr.mxu0 %v1198
    %1339 = vmatpush1.msra.mxu0 %v1197
    %1340 = vmatprep.subr.mxu0 %v1201
    %1341 = vmatpush1.msra.mxu0 %v1200
    %1342 = vmatprep.subr.mxu0 %v1204
    %1343 = vmatpush1.msra.mxu0 %v1203
    %1344 = vmatprep.subr.mxu0 %v1207
    %1345 = vmatpush1.msra.mxu0 %v1206
    %1346 = vmatprep.subr.mxu0 %v1210
    %1347 = vmatpush1.msra.mxu0 %v1209
    %1348 = vmatprep.subr.mxu0 %v1213
    %1349 = vmatpush1.msra.mxu0 %v1212
    %1350 = vmatprep.subr.mxu0 %v1216
    %1351 = vmatpush1.msra.mxu0 %v1215
    %1352 = vmatprep.subr.mxu0 %v1219
    %1353 = vmatpush1.msra.mxu0 %v1218
    %1354 = vmatprep.subr.mxu0 %v1222
    %1355 = vmatpush1.msra.mxu0 %v1221
    %1356 = vmatprep.subr.mxu0 %v1225
    %1357 = vmatpush1.msra.mxu0 %v1224
    %1358 = vmatprep.subr.mxu0 %v1228
    %1359 = vmatpush1.msra.mxu0 %v1227
    %1360 = vmatprep.subr.mxu0 %v1231
    %1361 = vmatpush1.msra.mxu0 %v1230
    %1362 = vmatprep.subr.mxu0 %v1234
    %1363 = vmatpush1.msra.mxu0 %v1233
    %1364 = vmatprep.subr.mxu0 %v1237
    %1365 = vmatpush1.msra.mxu0 %v1236
    %1366 = vmatprep.subr.mxu0 %v1240
    %1367 = vmatpush1.msra.mxu0 %v1239
    %1368 = vmatprep.subr.mxu0 %v1243
    %1369 = vmatpush1.msra.mxu0 %v1242
    %1370 = vmatprep.subr.mxu0 %v1246
    %1371 = vmatpush1.msra.mxu0 %v1245
    %1372 = vmatprep.mubr.f32.mxu0 %v1150
    %1373 = vmatmul.mubr.f32.gmra.mrb[0].mxu0 %v1149
    %v1374 = vpop.f32.mrb[0].mxu0
    %v1375 = vadd.f32 %v1299, %v1374
    %v1376 = vpop.f32.mrb[0].mxu0
    %v1377 = vadd.f32 %v1303, %v1376
    %1378 = vdwg.mxu0
    %1379 = vmatprep.subr.mxu0 %v1249
    %1380 = vmatpush1.msra.mxu0 %v1248
    %1381 = vmatprep.subr.mxu0 %v1252
    %1382 = vmatpush1.msra.mxu0 %v1251
    %1383 = vmatprep.subr.mxu0 %v1255
    %1384 = vmatpush1.msra.mxu0 %v1254
    %1385 = vmatprep.subr.mxu0 %v1258
    %1386 = vmatpush1.msra.mxu0 %v1257
    %1387 = vmatprep.subr.mxu0 %v1261
    %1388 = vmatpush1.msra.mxu0 %v1260
    %1389 = vmatprep.subr.mxu0 %v1264
    %1390 = vmatpush1.msra.mxu0 %v1263
    %1391 = vmatprep.subr.mxu0 %v1267
    %1392 = vmatpush1.msra.mxu0 %v1266
    %1393 = vmatprep.subr.mxu0 %v1270
    %1394 = vmatpush1.msra.mxu0 %v1269
    %1395 = vmatprep.subr.mxu0 %v1273
    %1396 = vmatpush1.msra.mxu0 %v1272
    %1397 = vmatprep.subr.mxu0 %v1276
    %1398 = vmatpush1.msra.mxu0 %v1275
    %1399 = vmatprep.subr.mxu0 %v1279
    %1400 = vmatpush1.msra.mxu0 %v1278
    %1401 = vmatprep.subr.mxu0 %v1282
    %1402 = vmatpush1.msra.mxu0 %v1281
    %1403 = vmatprep.subr.mxu0 %v1285
    %1404 = vmatpush1.msra.mxu0 %v1284
    %1405 = vmatprep.subr.mxu0 %v1288
    %1406 = vmatpush1.msra.mxu0 %v1287
    %1407 = vmatprep.subr.mxu0 %v1291
    %1408 = vmatpush1.msra.mxu0 %v1290
    %1409 = vmatprep.subr.mxu0 %v1294
    %1410 = vmatpush1.msra.mxu0 %v1293
    %1411 = vmatprep.subr.mxu0 0.0
    %1412 = vmatpush1.msra.mxu0 0.0
    %1413 = vmatprep.subr.mxu0 0.0
    %1414 = vmatpush1.msra.mxu0 0.0
    %1415 = vmatprep.subr.mxu0 0.0
    %1416 = vmatpush1.msra.mxu0 0.0
    %1417 = vmatprep.subr.mxu0 0.0
    %1418 = vmatpush1.msra.mxu0 0.0
    %1419 = vmatprep.subr.mxu0 0.0
    %1420 = vmatpush1.msra.mxu0 0.0
    %1421 = vmatprep.subr.mxu0 0.0
    %1422 = vmatpush1.msra.mxu0 0.0
    %1423 = vmatprep.subr.mxu0 0.0
    %1424 = vmatpush1.msra.mxu0 0.0
    %1425 = vmatprep.subr.mxu0 0.0
    %1426 = vmatpush1.msra.mxu0 0.0
    %1427 = vmatprep.subr.mxu0 0.0
    %1428 = vmatpush1.msra.mxu0 0.0
    %1429 = vmatprep.subr.mxu0 0.0
    %1430 = vmatpush1.msra.mxu0 0.0
    %1431 = vmatprep.subr.mxu0 0.0
    %1432 = vmatpush1.msra.mxu0 0.0
    %1433 = vmatprep.subr.mxu0 0.0
    %1434 = vmatpush1.msra.mxu0 0.0
    %1435 = vmatprep.subr.mxu0 0.0
    %1436 = vmatpush1.msra.mxu0 0.0
    %1437 = vmatprep.subr.mxu0 0.0
    %1438 = vmatpush1.msra.mxu0 0.0
    %1439 = vmatprep.subr.mxu0 0.0
    %1440 = vmatpush1.msra.mxu0 0.0
    %1441 = vmatprep.subr.mxu0 0.0
    %1442 = vmatpush1.msra.mxu0 0.0
    %1443 = vmatprep.mubr.f32.mxu0 0.0
    %1444 = vmatmul.mubr.f32.gmra.mrb[0].mxu0 %v1151
    %v1445 = vpop.f32.mrb[0].mxu0
    %v1446 = vadd.f32 %v1375, %v1445
    %v1447 = vpop.f32.mrb[0].mxu0
    %v1448 = vadd.f32 %v1377, %v1447
    %1449 = vdwg.mxu0
    %1450 = vmatprep.subr.mxu0 0.0
    %1451 = vmatpush1.msra.mxu0 %v1154
    %1452 = vmatprep.subr.mxu0 0.0
    %1453 = vmatpush1.msra.mxu0 %v1157
    %1454 = vmatprep.subr.mxu0 0.0
    %1455 = vmatpush1.msra.mxu0 %v1160
    %1456 = vmatprep.subr.mxu0 0.0
    %1457 = vmatpush1.msra.mxu0 %v1163
    %1458 = vmatprep.subr.mxu0 0.0
    %1459 = vmatpush1.msra.mxu0 %v1166
    %1460 = vmatprep.subr.mxu0 0.0
    %1461 = vmatpush1.msra.mxu0 %v1169
    %1462 = vmatprep.subr.mxu0 0.0
    %1463 = vmatpush1.msra.mxu0 %v1172
    %1464 = vmatprep.subr.mxu0 0.0
    %1465 = vmatpush1.msra.mxu0 %v1175
    %1466 = vmatprep.subr.mxu0 0.0
    %1467 = vmatpush1.msra.mxu0 %v1178
    %1468 = vmatprep.subr.mxu0 0.0
    %1469 = vmatpush1.msra.mxu0 %v1181
    %1470 = vmatprep.subr.mxu0 0.0
    %1471 = vmatpush1.msra.mxu0 %v1184
    %1472 = vmatprep.subr.mxu0 0.0
    %1473 = vmatpush1.msra.mxu0 %v1187
    %1474 = vmatprep.subr.mxu0 0.0
    %1475 = vmatpush1.msra.mxu0 %v1190
    %1476 = vmatprep.subr.mxu0 0.0
    %1477 = vmatpush1.msra.mxu0 %v1193
    %1478 = vmatprep.subr.mxu0 0.0
    %1479 = vmatpush1.msra.mxu0 %v1196
    %1480 = vmatprep.subr.mxu0 0.0
    %1481 = vmatpush1.msra.mxu0 %v1199
    %1482 = vmatprep.subr.mxu0 0.0
    %1483 = vmatpush1.msra.mxu0 %v1202
    %1484 = vmatprep.subr.mxu0 0.0
    %1485 = vmatpush1.msra.mxu0 %v1205
    %1486 = vmatprep.subr.mxu0 0.0
    %1487 = vmatpush1.msra.mxu0 %v1208
    %1488 = vmatprep.subr.mxu0 0.0
    %1489 = vmatpush1.msra.mxu0 %v1211
    %1490 = vmatprep.subr.mxu0 0.0
    %1491 = vmatpush1.msra.mxu0 %v1214
    %1492 = vmatprep.subr.mxu0 0.0
    %1493 = vmatpush1.msra.mxu0 %v1217
    %1494 = vmatprep.subr.mxu0 0.0
    %1495 = vmatpush1.msra.mxu0 %v1220
    %1496 = vmatprep.subr.mxu0 0.0
    %1497 = vmatpush1.msra.mxu0 %v1223
    %1498 = vmatprep.subr.mxu0 0.0
    %1499 = vmatpush1.msra.mxu0 %v1226
    %1500 = vmatprep.subr.mxu0 0.0
    %1501 = vmatpush1.msra.mxu0 %v1229
    %1502 = vmatprep.subr.mxu0 0.0
    %1503 = vmatpush1.msra.mxu0 %v1232
    %1504 = vmatprep.subr.mxu0 0.0
    %1505 = vmatpush1.msra.mxu0 %v1235
    %1506 = vmatprep.subr.mxu0 0.0
    %1507 = vmatpush1.msra.mxu0 %v1238
    %1508 = vmatprep.subr.mxu0 0.0
    %1509 = vmatpush1.msra.mxu0 %v1241
    %1510 = vmatprep.subr.mxu0 0.0
    %1511 = vmatpush1.msra.mxu0 %v1244
    %1512 = vmatprep.subr.mxu0 0.0
    %1513 = vmatpush1.msra.mxu0 %v1247
    %1514 = vmatprep.mubr.f32.mxu0 %v1150
    %1515 = vmatmul.mubr.f32.gmra.mrb[0].mxu0 %v1149
    %v1516 = vpop.f32.mrb[0].mxu0
    %v1517 = vadd.f32 %v1307, %v1516
    %v1518 = vpop.f32.mrb[0].mxu0
    %1519 = vdwg.mxu0
    %1520 = vmatprep.subr.mxu0 0.0
    %1521 = vmatpush1.msra.mxu0 %v1250
    %1522 = vmatprep.subr.mxu0 0.0
    %1523 = vmatpush1.msra.mxu0 %v1253
    %1524 = vmatprep.subr.mxu0 0.0
    %1525 = vmatpush1.msra.mxu0 %v1256
    %1526 = vmatprep.subr.mxu0 0.0
    %1527 = vmatpush1.msra.mxu0 %v1259
    %1528 = vmatprep.subr.mxu0 0.0
    %1529 = vmatpush1.msra.mxu0 %v1262
    %1530 = vmatprep.subr.mxu0 0.0
    %1531 = vmatpush1.msra.mxu0 %v1265
    %1532 = vmatprep.subr.mxu0 0.0
    %1533 = vmatpush1.msra.mxu0 %v1268
    %1534 = vmatprep.subr.mxu0 0.0
    %1535 = vmatpush1.msra.mxu0 %v1271
    %1536 = vmatprep.subr.mxu0 0.0
    %1537 = vmatpush1.msra.mxu0 %v1274
    %1538 = vmatprep.subr.mxu0 0.0
    %1539 = vmatpush1.msra.mxu0 %v1277
    %1540 = vmatprep.subr.mxu0 0.0
    %1541 = vmatpush1.msra.mxu0 %v1280
    %1542 = vmatprep.subr.mxu0 0.0
    %1543 = vmatpush1.msra.mxu0 %v1283
    %1544 = vmatprep.subr.mxu0 0.0
    %1545 = vmatpush1.msra.mxu0 %v1286
    %1546 = vmatprep.subr.mxu0 0.0
    %1547 = vmatpush1.msra.mxu0 %v1289
    %1548 = vmatprep.subr.mxu0 0.0
    %1549 = vmatpush1.msra.mxu0 %v1292
    %1550 = vmatprep.subr.mxu0 0.0
    %1551 = vmatpush1.msra.mxu0 %v1295
    %1552 = vmatprep.subr.mxu0 0.0
    %1553 = vmatpush1.msra.mxu0 0.0
    %1554 = vmatprep.subr.mxu0 0.0
    %1555 = vmatpush1.msra.mxu0 0.0
    %1556 = vmatprep.subr.mxu0 0.0
    %1557 = vmatpush1.msra.mxu0 0.0
    %1558 = vmatprep.subr.mxu0 0.0
    %1559 = vmatpush1.msra.mxu0 0.0
    %1560 = vmatprep.subr.mxu0 0.0
    %1561 = vmatpush1.msra.mxu0 0.0
    %1562 = vmatprep.subr.mxu0 0.0
    %1563 = vmatpush1.msra.mxu0 0.0
    %1564 = vmatprep.subr.mxu0 0.0
    %1565 = vmatpush1.msra.mxu0 0.0
    %1566 = vmatprep.subr.mxu0 0.0
    %1567 = vmatpush1.msra.mxu0 0.0
    %1568 = vmatprep.subr.mxu0 0.0
    %1569 = vmatpush1.msra.mxu0 0.0
    %1570 = vmatprep.subr.mxu0 0.0
    %1571 = vmatpush1.msra.mxu0 0.0
    %1572 = vmatprep.subr.mxu0 0.0
    %1573 = vmatpush1.msra.mxu0 0.0
    %1574 = vmatprep.subr.mxu0 0.0
    %1575 = vmatpush1.msra.mxu0 0.0
    %1576 = vmatprep.subr.mxu0 0.0
    %1577 = vmatpush1.msra.mxu0 0.0
    %1578 = vmatprep.subr.mxu0 0.0
    %1579 = vmatpush1.msra.mxu0 0.0
    %1580 = vmatprep.subr.mxu0 0.0
    %1581 = vmatpush1.msra.mxu0 0.0
    %1582 = vmatprep.subr.mxu0 0.0
    %1583 = vmatpush1.msra.mxu0 0.0
    %1584 = vmatprep.mubr.f32.mxu0 0.0
    %1585 = vmatmul.mubr.f32.gmra.mrb[0].mxu0 %v1151
    %v1586 = vpop.f32.mrb[0].mxu0
    %v1587 = vadd.f32 %v1517, %v1586
    %v1588 = vpop.f32.mrb[0].mxu0
    %1589 = vdwg.mxu0
    %v1590 = vrot.slane %v1446, 4
    %v1591 = vadd.f32 %v1446, %v1590
    %v1592 = vrot.slane %v1591, 2
    %v1593 = vadd.f32 %v1591, %v1592
    %v1594 = vrot.slane %v1593, 1
    %v1595 = vadd.f32 %v1593, %v1594
    %v1596 = vrot.slane %v1448, 4
    %v1597 = vadd.f32 %v1448, %v1596
    %v1598 = vrot.slane %v1597, 2
    %v1599 = vadd.f32 %v1597, %v1598
    %v1600 = vrot.slane %v1599, 1
    %v1601 = vadd.f32 %v1599, %v1600
    %v1602 = vrot.slane %v1587, 4
    %v1603 = vadd.f32 %v1587, %v1602
    %v1604 = vrot.slane %v1603, 2
    %v1605 = vadd.f32 %v1603, %v1604
    %v1606 = vrot.slane %v1605, 1
    %v1607 = vadd.f32 %v1605, %v1606
    %v1608 = vmul.f32 %v1595, %v126
    %v1609 = vmul.f32 %v1601, %v126
    %v1610 = vmul.f32 %v1607, %v126
    %v1611 = vmul.f32 %v1446, %v1446
    %v1612 = vmul.f32 %v1448, %v1448
    %v1613 = vmul.f32 %v1587, %v1587
    %v1614 = vrot.slane %v1611, 4
    %v1615 = vadd.f32 %v1611, %v1614
    %v1616 = vrot.slane %v1615, 2
    %v1617 = vadd.f32 %v1615, %v1616
    %v1618 = vrot.slane %v1617, 1
    %v1619 = vadd.f32 %v1617, %v1618
    %v1620 = vrot.slane %v1612, 4
    %v1621 = vadd.f32 %v1612, %v1620
    %v1622 = vrot.slane %v1621, 2
    %v1623 = vadd.f32 %v1621, %v1622
    %v1624 = vrot.slane %v1623, 1
    %v1625 = vadd.f32 %v1623, %v1624
    %v1626 = vrot.slane %v1613, 4
    %v1627 = vadd.f32 %v1613, %v1626
    %v1628 = vrot.slane %v1627, 2
    %v1629 = vadd.f32 %v1627, %v1628
    %v1630 = vrot.slane %v1629, 1
    %v1631 = vadd.f32 %v1629, %v1630
    %v1632 = vmul.f32 %v1619, %v126
    %v1633 = vmul.f32 %v1625, %v126
    %v1634 = vmul.f32 %v1631, %v126
    %v1635 = vmul.f32 %v1608, %v1608
    %v1636 = vmul.f32 %v1609, %v1609
    %v1637 = vmul.f32 %v1610, %v1610
    %v1638 = vsub.f32 %v1632, %v1635
    %v1639 = vsub.f32 %v1633, %v1636
    %v1640 = vsub.f32 %v1634, %v1637
    %v1641 = vmax.f32 %v1638, 0.0
    %v1642 = vmax.f32 %v1639, 0.0
    %v1643 = vmax.f32 %v1640, 0.0
    %v1644 = vadd.f32 %v1641, 1e-05
    %v1645 = vadd.f32 %v1642, 1e-05
    %v1646 = vadd.f32 %v1643, 1e-05
    %v1647 = vrsqrt.pop %v1644
    %v1648 = vrsqrt.pop %v1645
    %v1649 = vrsqrt.pop %v1646
    %v1650 = vmul.f32 %v1647, %v114
    %v1651 = vmul.f32 %v1648, %v115
    %v1652 = vmul.f32 %v1649, %v116
    %v1653 = vlaneseq
    %v1654 = vshrl.u32 %v1653, 7
    %v1655 = vsub.s32 0, %v1654
    %v1656 = vrot.slane %v1650, %v1655
    %v1657 = vlaneseq
    %v1658 = vshrl.u32 %v1657, 7
    %v1659 = vsub.s32 0, %v1658
    %v1660 = vrot.slane %v1651, %v1659
    %v1661 = vlaneseq
    %v1662 = vshrl.u32 %v1661, 7
    %v1663 = vsub.s32 0, %v1662
    %v1664 = vrot.slane %v1652, %v1663
    %v1665 = vmul.f32 %v1446, %v1656
    %v1666 = vmul.f32 %v1448, %v1660
    %v1667 = vmul.f32 %v1587, %v1664
    %v1668 = vmul.f32 %v1608, %v1650
    %v1669 = vmul.f32 %v1609, %v1651
    %v1670 = vmul.f32 %v1610, %v1652
    %v1674 = vrot.slane %v1668, 7
    %v1675 = vrot.slane %v1669, 7
    %v1676 = vrot.slane %v1670, 7
    %v1680 = vsub.f32 %v114, %v1674
    %v1681 = vsub.f32 %v115, %v1675
    %v1682 = vsub.f32 %v116, %v1676
    %v1683 = vlaneseq
    %v1684 = vshrl.u32 %v1683, 7
    %v1685 = vsub.s32 1, %v1684
    %v1686 = vrot.slane %v1680, %v1685
    %v1687 = vlaneseq
    %v1688 = vshrl.u32 %v1687, 7
    %v1689 = vsub.s32 1, %v1688
    %v1690 = vrot.slane %v1681, %v1689
    %v1691 = vlaneseq
    %v1692 = vshrl.u32 %v1691, 7
    %v1693 = vsub.s32 1, %v1692
    %v1694 = vrot.slane %v1682, %v1693
    %v1695 = vadd.f32 %v1665, %v1686
    %v1696 = vadd.f32 %v1666, %v1690
    %v1697 = vadd.f32 %v1667, %v1694
    %v1698 = vmax.f32 %v1695, 0.0
    %v1699 = vmax.f32 %v1696, 0.0
    %v1700 = vmax.f32 %v1697, 0.0
    %v1701 = vld [vmem:[#allocation11] sm:$0xff]
    %v1702 = vld [vmem:[#allocation11 + $0x8] sm:$0xff]
    %v1703 = vld [vmem:[#allocation11 + $0x10] sm:$0xff]
    %v1704 = vld [vmem:[#allocation11 + $0x18] sm:$0xff]
    %v1705 = vld [vmem:[#allocation11 + $0x20] sm:$0xff]
    %v1706 = vld [vmem:[#allocation11 + $0x28] sm:$0xff]
    %v1707 = vld [vmem:[#allocation11 + $0x30] sm:$0xff]
    %v1708 = vld [vmem:[#allocation11 + $0x38] sm:$0xff]
    %v1709 = vld [vmem:[#allocation11 + $0x40] sm:$0xff]
    %v1710 = vld [vmem:[#allocation11 + $0x48] sm:$0xff]
    %v1711 = vld [vmem:[#allocation11 + $0x50] sm:$0xff]
    %v1712 = vld [vmem:[#allocation11 + $0x58] sm:$0xff]
    %v1713 = vld [vmem:[#allocation11 + $0x60] sm:$0xff]
    %v1714 = vld [vmem:[#allocation11 + $0x68] sm:$0xff]
    %v1715 = vld [vmem:[#allocation11 + $0x70] sm:$0xff]
    %v1716 = vld [vmem:[#allocation11 + $0x78] sm:$0xff]
    %v1717 = vld [vmem:[#allocation11 + $0x80] sm:$0xff]
    %v1718 = vld [vmem:[#allocation11 + $0x88] sm:$0xff]
    %v1719 = vld [vmem:[#allocation11 + $0x90] sm:$0xff]
    %v1720 = vld [vmem:[#allocation11 + $0x98] sm:$0xff]
    %v1721 = vld [vmem:[#allocation11 + $0xa0] sm:$0xff]
    %v1722 = vld [vmem:[#allocation11 + $0xa8] sm:$0xff]
    %v1723 = vld [vmem:[#allocation11 + $0xb0] sm:$0xff]
    %v1724 = vld [vmem:[#allocation11 + $0xb8] sm:$0xff]
    %v1725 = vld [vmem:[#allocation11 + $0xc0] sm:$0xff]
    %v1726 = vld [vmem:[#allocation11 + $0xc8] sm:$0xff]
    %v1727 = vld [vmem:[#allocation11 + $0xd0] sm:$0xff]
    %v1728 = vld [vmem:[#allocation11 + $0xd8] sm:$0xff]
    %v1729 = vld [vmem:[#allocation11 + $0xe0] sm:$0xff]
    %v1730 = vld [vmem:[#allocation11 + $0xe8] sm:$0xff]
    %v1731 = vld [vmem:[#allocation11 + $0xf0] sm:$0xff]
    %v1732 = vld [vmem:[#allocation11 + $0xf8] sm:$0xff]
    %v1733 = vld [vmem:[#allocation11 + $0x100] sm:$0xff]
    %v1734 = vld [vmem:[#allocation11 + $0x108] sm:$0xff]
    %v1735 = vld [vmem:[#allocation11 + $0x110] sm:$0xff]
    %v1736 = vld [vmem:[#allocation11 + $0x118] sm:$0xff]
    %v1737 = vld [vmem:[#allocation11 + $0x120] sm:$0xff]
    %v1738 = vld [vmem:[#allocation11 + $0x128] sm:$0xff]
    %v1739 = vld [vmem:[#allocation11 + $0x130] sm:$0xff]
    %v1740 = vld [vmem:[#allocation11 + $0x138] sm:$0xff]
    %v1741 = vld [vmem:[#allocation11 + $0x140] sm:$0xff]
    %v1742 = vld [vmem:[#allocation11 + $0x148] sm:$0xff]
    %v1743 = vld [vmem:[#allocation11 + $0x150] sm:$0xff]
    %v1744 = vld [vmem:[#allocation11 + $0x158] sm:$0xff]
    %v1745 = vld [vmem:[#allocation11 + $0x160] sm:$0xff]
    %v1746 = vld [vmem:[#allocation11 + $0x168] sm:$0xff]
    %v1747 = vld [vmem:[#allocation11 + $0x170] sm:$0xff]
    %v1748 = vld [vmem:[#allocation11 + $0x178] sm:$0xff]
    %v1749 = vlaneseq
    %v1750 = vshrl.u32 %v1749, 7
    %v1751 = vsub.s32 2, %v1750
    %v1752 = vrot.slane %v114, %v1751
    %1753 = vmatprep.subr.mxu0 0.0
    %1754 = vmatpush1.msra.mxu0 %v1701
    %1755 = vmatprep.subr.mxu0 0.0
    %1756 = vmatpush1.msra.mxu0 %v1702
    %1757 = vmatprep.subr.mxu0 0.0
    %1758 = vmatpush1.msra.mxu0 %v1703
    %1759 = vmatprep.subr.mxu0 0.0
    %1760 = vmatpush1.msra.mxu0 %v1704
    %1761 = vmatprep.subr.mxu0 0.0
    %1762 = vmatpush1.msra.mxu0 %v1705
    %1763 = vmatprep.subr.mxu0 0.0
    %1764 = vmatpush1.msra.mxu0 %v1706
    %1765 = vmatprep.subr.mxu0 0.0
    %1766 = vmatpush1.msra.mxu0 %v1707
    %1767 = vmatprep.subr.mxu0 0.0
    %1768 = vmatpush1.msra.mxu0 %v1708
    %1769 = vmatprep.subr.mxu0 0.0
    %1770 = vmatpush1.msra.mxu0 %v1709
    %1771 = vmatprep.subr.mxu0 0.0
    %1772 = vmatpush1.msra.mxu0 %v1710
    %1773 = vmatprep.subr.mxu0 0.0
    %1774 = vmatpush1.msra.mxu0 %v1711
    %1775 = vmatprep.subr.mxu0 0.0
    %1776 = vmatpush1.msra.mxu0 %v1712
    %1777 = vmatprep.subr.mxu0 0.0
    %1778 = vmatpush1.msra.mxu0 %v1713
    %1779 = vmatprep.subr.mxu0 0.0
    %1780 = vmatpush1.msra.mxu0 %v1714
    %1781 = vmatprep.subr.mxu0 0.0
    %1782 = vmatpush1.msra.mxu0 %v1715
    %1783 = vmatprep.subr.mxu0 0.0
    %1784 = vmatpush1.msra.mxu0 %v1716
    %1785 = vmatprep.subr.mxu0 0.0
    %1786 = vmatpush1.msra.mxu0 %v1717
    %1787 = vmatprep.subr.mxu0 0.0
    %1788 = vmatpush1.msra.mxu0 %v1718
    %1789 = vmatprep.subr.mxu0 0.0
    %1790 = vmatpush1.msra.mxu0 %v1719
    %1791 = vmatprep.subr.mxu0 0.0
    %1792 = vmatpush1.msra.mxu0 %v1720
    %1793 = vmatprep.subr.mxu0 0.0
    %1794 = vmatpush1.msra.mxu0 %v1721
    %1795 = vmatprep.subr.mxu0 0.0
    %1796 = vmatpush1.msra.mxu0 %v1722
    %1797 = vmatprep.subr.mxu0 0.0
    %1798 = vmatpush1.msra.mxu0 %v1723
    %1799 = vmatprep.subr.mxu0 0.0
    %1800 = vmatpush1.msra.mxu0 %v1724
    %1801 = vmatprep.subr.mxu0 0.0
    %1802 = vmatpush1.msra.mxu0 %v1725
    %1803 = vmatprep.subr.mxu0 0.0
    %1804 = vmatpush1.msra.mxu0 %v1726
    %1805 = vmatprep.subr.mxu0 0.0
    %1806 = vmatpush1.msra.mxu0 %v1727
    %1807 = vmatprep.subr.mxu0 0.0
    %1808 = vmatpush1.msra.mxu0 %v1728
    %1809 = vmatprep.subr.mxu0 0.0
    %1810 = vmatpush1.msra.mxu0 %v1729
    %1811 = vmatprep.subr.mxu0 0.0
    %1812 = vmatpush1.msra.mxu0 %v1730
    %1813 = vmatprep.subr.mxu0 0.0
    %1814 = vmatpush1.msra.mxu0 %v1731
    %1815 = vmatprep.subr.mxu0 0.0
    %1816 = vmatpush1.msra.mxu0 %v1732
    %1817 = vmatprep.mubr.f32.mxu0 %v1699
    %1818 = vmatmul.mubr.f32.gmra.mrb[0].mxu0 %v1698
    %v1819 = vpop.f32.mrb[0].mxu0
    %v1820 = vadd.f32 %v1752, %v1819
    %v1821 = vpop.f32.mrb[0].mxu0
    %1822 = vdwg.mxu0
    %1823 = vmatprep.subr.mxu0 0.0
    %1824 = vmatpush1.msra.mxu0 %v1733
    %1825 = vmatprep.subr.mxu0 0.0
    %1826 = vmatpush1.msra.mxu0 %v1734
    %1827 = vmatprep.subr.mxu0 0.0
    %1828 = vmatpush1.msra.mxu0 %v1735
    %1829 = vmatprep.subr.mxu0 0.0
    %1830 = vmatpush1.msra.mxu0 %v1736
    %1831 = vmatprep.subr.mxu0 0.0
    %1832 = vmatpush1.msra.mxu0 %v1737
    %1833 = vmatprep.subr.mxu0 0.0
    %1834 = vmatpush1.msra.mxu0 %v1738
    %1835 = vmatprep.subr.mxu0 0.0
    %1836 = vmatpush1.msra.mxu0 %v1739
    %1837 = vmatprep.subr.mxu0 0.0
    %1838 = vmatpush1.msra.mxu0 %v1740
    %1839 = vmatprep.subr.mxu0 0.0
    %1840 = vmatpush1.msra.mxu0 %v1741
    %1841 = vmatprep.subr.mxu0 0.0
    %1842 = vmatpush1.msra.mxu0 %v1742
    %1843 = vmatprep.subr.mxu0 0.0
    %1844 = vmatpush1.msra.mxu0 %v1743
    %1845 = vmatprep.subr.mxu0 0.0
    %1846 = vmatpush1.msra.mxu0 %v1744
    %1847 = vmatprep.subr.mxu0 0.0
    %1848 = vmatpush1.msra.mxu0 %v1745
    %1849 = vmatprep.subr.mxu0 0.0
    %1850 = vmatpush1.msra.mxu0 %v1746
    %1851 = vmatprep.subr.mxu0 0.0
    %1852 = vmatpush1.msra.mxu0 %v1747
    %1853 = vmatprep.subr.mxu0 0.0
    %1854 = vmatpush1.msra.mxu0 %v1748
    %1855 = vmatprep.subr.mxu0 0.0
    %1856 = vmatpush1.msra.mxu0 0.0
    %1857 = vmatprep.subr.mxu0 0.0
    %1858 = vmatpush1.msra.mxu0 0.0
    %1859 = vmatprep.subr.mxu0 0.0
    %1860 = vmatpush1.msra.mxu0 0.0
    %1861 = vmatprep.subr.mxu0 0.0
    %1862 = vmatpush1.msra.mxu0 0.0
    %1863 = vmatprep.subr.mxu0 0.0
    %1864 = vmatpush1.msra.mxu0 0.0
    %1865 = vmatprep.subr.mxu0 0.0
    %1866 = vmatpush1.msra.mxu0 0.0
    %1867 = vmatprep.subr.mxu0 0.0
    %1868 = vmatpush1.msra.mxu0 0.0
    %1869 = vmatprep.subr.mxu0 0.0
    %1870 = vmatpush1.msra.mxu0 0.0
    %1871 = vmatprep.subr.mxu0 0.0
    %1872 = vmatpush1.msra.mxu0 0.0
    %1873 = vmatprep.subr.mxu0 0.0
    %1874 = vmatpush1.msra.mxu0 0.0
    %1875 = vmatprep.subr.mxu0 0.0
    %1876 = vmatpush1.msra.mxu0 0.0
    %1877 = vmatprep.subr.mxu0 0.0
    %1878 = vmatpush1.msra.mxu0 0.0
    %1879 = vmatprep.subr.mxu0 0.0
    %1880 = vmatpush1.msra.mxu0 0.0
    %1881 = vmatprep.subr.mxu0 0.0
    %1882 = vmatpush1.msra.mxu0 0.0
    %1883 = vmatprep.subr.mxu0 0.0
    %1884 = vmatpush1.msra.mxu0 0.0
    %1885 = vmatprep.subr.mxu0 0.0
    %1886 = vmatpush1.msra.mxu0 0.0
    %1887 = vmatprep.mubr.f32.mxu0 0.0
    %1888 = vmatmul.mubr.f32.gmra.mrb[0].mxu0 %v1700
    %v1889 = vpop.f32.mrb[0].mxu0
    %v1890 = vadd.f32 %v1820, %v1889
    %v1891 = vpop.f32.mrb[0].mxu0
    %1892 = vdwg.mxu0
    %1893 = vst [vmem:[#allocation13] sm:$0xff] %v1890
    // Predicated region
    $region62: #{tpu_custom_call.1} parent=1 // pred_check
      _
    $region63: #{tpu_custom_call.1} parent=1 // pred_check_branch
      %1895 = sbr.rel (0) target = $region65
    $region64: #{tpu_custom_call.1} parent=1 // pred_region
      %s1897 = ssub.s32 128, 128
      %1898 = vsyncadd [#allocation4], %s1897
      %s1900 = sshll.u32 [#allocation13], 4
      %s1901 = int_to_ptr.vmem [resolvable:$true] %s1900
      %1903 = dma.vmem_to_hbm [thread:$0]  %s1901, 128, %s9, [#allocation4]
    $region65: #{tpu_custom_call.1} parent=1 // pred_fallthru
      _
    // Predicated region
    $region66: #{tpu_custom_call.1} parent=1 // pred_check
      _
    $region67: #{tpu_custom_call.1} parent=1 // pred_check_branch
      %1905 = sbr.rel (0) target = $region69
    $region68: #{tpu_custom_call.1} parent=1 // pred_region
      %1906 = dma.done [#allocation4], 128
    $region69: #{tpu_custom_call.1} parent=1 // pred_fallthru
      _
    %1907 = vsyncpa [#allocation3], 1
    %1908 = vsyncpa [#allocation6], 1
    %1909 = vsyncpa [#allocation9], 1
    %1910 = vsyncpa [#allocation12], 1
    %1911 = vsyncpa [#allocation4], 1

</llo_original>
